<compile_context>
chip_gen: v7x
topology: tpu7x:2x2x1
jax: 0.10.0
libtpu: 0.0.40
codegen_flags: <defaults>
</compile_context>

<pallas_src>
import functools
import numpy as np

import jax
import jax.numpy as jnp
from jax.experimental import pallas as pl
from jax.experimental.pallas import tpu as pltpu


NUM_CLASSES = 20
_BN_EPS = 1e-5
_MIN_PALLAS_M = 128   # below this, the GEMM goes to XLA (launch overhead dominates)


# ----------------------------------------------------------------------------
# Static (non-traced) layer configuration.  Keeping this OUT of the jitted
# params pytree avoids TracerBoolConversionError on `if k == 1: ...`.
# ----------------------------------------------------------------------------
LAYER_CONFIGS = {
    # name        ic    oc          k  stride pad relu   bn
    "stage1":     dict(ic=3,    oc=64,          k=4, stride=4, pad=0, relu=True,  bn=True),
    "stage2":     dict(ic=64,   oc=256,         k=3, stride=1, pad=1, relu=True,  bn=True),
    "stage3":     dict(ic=256,  oc=512,         k=3, stride=2, pad=1, relu=True,  bn=True),
    "stage4":     dict(ic=512,  oc=1024,        k=3, stride=2, pad=1, relu=True,  bn=True),
    "stage5":     dict(ic=1024, oc=2048,        k=3, stride=1, pad=1, relu=True,  bn=True),
    "classifier": dict(ic=2048, oc=NUM_CLASSES, k=1, stride=1, pad=0, relu=False, bn=False),
}


# ----------------------------------------------------------------------------
# Pallas kernel: tiled GEMM, bf16 MXU, f32 accumulation directly in the output
# block, fused per-column shift (+ optional ReLU) epilogue.
# ----------------------------------------------------------------------------
def _gemm_kernel(a_ref, b_ref, shift_ref, o_ref, *, relu):
    k = pl.program_id(2)

    @pl.when(k == 0)
    def _init():
        o_ref[...] = jnp.zeros_like(o_ref)

    # bf16 x bf16 -> f32 on the MXU; accumulate into the k-invariant output
    # block (no separate VMEM accumulator scratch).
    o_ref[...] += jnp.dot(a_ref[...], b_ref[...],
                          preferred_element_type=jnp.float32)

    @pl.when(k == pl.num_programs(2) - 1)
    def _epilogue():
        r = o_ref[...] + shift_ref[...]
        if relu:
            r = jnp.maximum(r, 0.0)
        o_ref[...] = r


def _choose_tk(K, tn):
    """Full-K block if the (K, tn) bf16 weight tile is small (<= 2 MiB),
    otherwise the largest 128-multiple tile that divides K (no per-call pad)."""
    if K * tn * 2 <= 2 * 1024 * 1024:
        return K
    for cand in (4096, 2048, 1024, 512, 256, 128):
        if K % cand == 0:
            return cand
    return K   # TODO(synk): a generic K would need one-off padding; unused here.


def pallas_gemm(a, b, shift, *, relu):
    """a: (M, K) bf16, b: (K, Np) bf16 with Np a multiple of 128 (padded at
    init), shift: (1, Np) f32.  Returns (M, Np) f32 = act(a @ b + shift)."""
    M, K = a.shape
    Kb, Np = b.shape
    assert K == Kb and Np % 128 == 0
    tn = 128 if Np % 256 else 256          # small-OC layers keep tn=128
    tm = 256 if M >= 256 else 128
    tk = _choose_tk(K, tn)

    mp = -M % tm
    if mp:                                  # cheap row pad (activations only)
        a = jnp.pad(a, ((0, mp), (0, 0)))
    Mp = M + mp
    grid = (Mp // tm, Np // tn, K // tk)    # reduction axis last

    out = pl.pallas_call(
        functools.partial(_gemm_kernel, relu=relu),
        out_shape=jax.ShapeDtypeStruct((Mp, Np), jnp.float32),
        grid_spec=pltpu.PrefetchScalarGridSpec(
            num_scalar_prefetch=0,
            grid=grid,
            in_specs=[
                pl.BlockSpec((tm, tk), lambda m, n, k: (m, k)),
                # NOTE: pipeline_mode=pl.Buffered(3) on this spec is an option
                # for very long K if DMA waits show up in the bundle dump.
                pl.BlockSpec((tk, tn), lambda m, n, k: (k, n)),
                pl.BlockSpec((1, tn), lambda m, n, k: (0, n)),
            ],
            out_specs=pl.BlockSpec((tm, tn), lambda m, n, k: (m, n)),
        ),
        compiler_params=pltpu.CompilerParams(
            # M and N shard across the 2 TensorCores on v7x; K is the reduction.
            dimension_semantics=("parallel", "parallel", "arbitrary")),
    )(a, b, shift)
    return out[:M]


# ----------------------------------------------------------------------------
# Conv-as-GEMM glue
# ----------------------------------------------------------------------------
def _im2col(x, kh, kw, stride, pad):
    if pad > 0:
        x = jnp.pad(x, ((0, 0), (0, 0), (pad, pad), (pad, pad)))
    B, C, H, W = x.shape
    Ho = (H - kh) // stride + 1
    Wo = (W - kw) // stride + 1
    cols = []
    for i in range(kh):
        for j in range(kw):
            cols.append(x[:, :, i:i + stride * Ho:stride, j:j + stride * Wo:stride])
    patches = jnp.stack(cols, axis=2)                      # (B, C, kh*kw, Ho, Wo)
    patches = patches.reshape(B, C * kh * kw, Ho, Wo)      # col = c*kh*kw + i*kw + j
    patches = patches.transpose(0, 2, 3, 1).reshape(B * Ho * Wo, C * kh * kw)
    return patches, Ho, Wo


def dense_apply(a, layer, cfg):
    """a: (M, K) f32.  Returns (M, OC) f32 with fused shift (+ReLU) epilogue."""
    a16 = a.astype(jnp.bfloat16)
    if a.shape[0] < _MIN_PALLAS_M:
        # Tiny GEMM (e.g. GAP -> classifier, M = batch): XLA beats a kernel launch.
        y = jnp.dot(a16, layer["w"], preferred_element_type=jnp.float32)
        y = y + layer["shift"]
        if cfg["relu"]:
            y = jnp.maximum(y, 0.0)
    else:
        y = pallas_gemm(a16, layer["w"], layer["shift"], relu=cfg["relu"])
    return y[:, :cfg["oc"]]


def conv2d_apply(x, layer, cfg):
    """Conv2d (NCHW) with folded BN scale, fused shift/ReLU, via the Pallas GEMM."""
    B = x.shape[0]
    k, stride, pad = cfg["k"], cfg["stride"], cfg["pad"]
    if k == 1 and stride == 1 and pad == 0:
        _, C, H, W = x.shape
        a = x.transpose(0, 2, 3, 1).reshape(B * H * W, C)   # 1x1: no im2col needed
        Ho, Wo = H, W
    else:
        a, Ho, Wo = _im2col(x, k, k, stride, pad)
    y = dense_apply(a, layer, cfg)                          # (B*Ho*Wo, OC)
    return y.reshape(B, Ho, Wo, cfg["oc"]).transpose(0, 3, 1, 2)


def global_average_pooling_2d(x, keepdims=False):
    return jnp.mean(x, axis=(2, 3), keepdims=keepdims)


# ----------------------------------------------------------------------------
# Parameters (deterministic synthetic init, BN folded + padded + bf16 at build)
# ----------------------------------------------------------------------------
def _conv_layer(key, cfg):
    ic, oc, k = cfg["ic"], cfg["oc"], cfg["k"]
    w = jax.random.normal(key, (oc, ic, k, k), jnp.float32) / np.sqrt(ic * k * k)
    wmat = w.reshape(oc, ic * k * k).T                      # (K, OC), matches im2col
    if cfg["bn"]:
        # FixedBatchNorm (inference mode) with synthetic running stats.
        gamma = jnp.ones((oc,), jnp.float32)
        beta = jnp.zeros((oc,), jnp.float32)
        mean = jnp.zeros((oc,), jnp.float32)
        var = jnp.ones((oc,), jnp.float32)
        scale = gamma / jnp.sqrt(var + _BN_EPS)
        shift = beta - mean * scale
        wmat = wmat * scale[None, :]                        # fold BN scale into weights
    else:
        shift = jnp.zeros((oc,), jnp.float32)               # classifier: bias=False
    tn = 128 if oc <= 128 else 256
    npad = -oc % tn
    wmat = jnp.pad(wmat, ((0, 0), (0, npad))).astype(jnp.bfloat16)  # pad N once, at init
    shift = jnp.pad(shift, (0, npad)).reshape(1, -1)
    return {"w": wmat, "shift": shift}                       # arrays only (jit-safe)


def init_params(key):
    # TODO(synk): ResNet-50 Bottleneck stages + pretrained checkpoint replaced by a
    # deterministic strided-conv stand-in (matching channel counts, /16 stride).
    names = list(LAYER_CONFIGS.keys())
    ks = jax.random.split(key, len(names))
    return {name: _conv_layer(k, LAYER_CONFIGS[name]) for name, k in zip(names, ks)}


# ----------------------------------------------------------------------------
# Classifier_For_Positive_Pooling.forward
# ----------------------------------------------------------------------------
def classifier_forward(params, x, with_cam=False):
    x = conv2d_apply(x, params["stage1"], LAYER_CONFIGS["stage1"])
    x = conv2d_apply(x, params["stage2"], LAYER_CONFIGS["stage2"])
    x = conv2d_apply(x, params["stage3"], LAYER_CONFIGS["stage3"])
    x = conv2d_apply(x, params["stage4"], LAYER_CONFIGS["stage4"])
    x = conv2d_apply(x, params["stage5"], LAYER_CONFIGS["stage5"])
    cls_cfg = LAYER_CONFIGS["classifier"]
    if with_cam:
        features = conv2d_apply(x, params["classifier"], cls_cfg)   # CAMs (B, C, H, W)
        logits = global_average_pooling_2d(features)                 # (B, C)
        return logits, features
    xg = global_average_pooling_2d(x, keepdims=True)                 # (B, 2048, 1, 1)
    logits = conv2d_apply(xg, params["classifier"], cls_cfg).reshape(-1, NUM_CLASSES)
    return logits


if __name__ == "__main__":
    key = jax.random.PRNGKey(0)
    kp, kx, ka, kb = jax.random.split(key, 4)
    params = init_params(kp)
    x = jax.random.normal(kx, (2, 3, 128, 128), jnp.float32)

    # --- unit check: Pallas GEMM vs XLA (same bf16 inputs, f32 accumulation) ---
    M, K, N = 256, 4608, 256            # exercises the K-tiled accumulation path
    a = jax.random.normal(ka, (M, K), jnp.float32)
    b = jax.random.normal(kb, (K, N), jnp.float32) / np.sqrt(K)
    a16, b16 = a.astype(jnp.bfloat16), b.astype(jnp.bfloat16)
    got = pallas_gemm(a16, b16, jnp.zeros((1, N), jnp.float32), relu=False)
    ref = jnp.dot(a16, b16, preferred_element_type=jnp.float32)
    np.testing.assert_allclose(np.asarray(got), np.asarray(ref), rtol=2e-2, atol=2e-2)

    # --- full forward, both branches (with_cam is a static flag via partial) ---
    fwd_cam = jax.jit(functools.partial(classifier_forward, with_cam=True))
    fwd = jax.jit(classifier_forward)
    logits, features = fwd_cam(params, x)
    logits_nocam = fwd(params, x)
    jax.block_until_ready((logits, features, logits_nocam))

    assert logits.shape == (2, NUM_CLASSES), logits.shape
    assert features.shape == (2, NUM_CLASSES, 8, 8), features.shape
    assert logits_nocam.shape == (2, NUM_CLASSES), logits_nocam.shape
    assert bool(jnp.all(jnp.isfinite(logits)))
    assert bool(jnp.all(jnp.isfinite(features)))
    assert bool(jnp.all(jnp.isfinite(logits_nocam)))
    # GAP commutes with the bias-free 1x1 classifier: both branches must agree
    # up to bf16 rounding of the two GEMM paths.
    np.testing.assert_allclose(np.asarray(logits), np.asarray(logits_nocam),
                               rtol=1e-2, atol=1e-1)
    print("KERNEL_OK")
</pallas_src>

<mosaic_0001>
module attributes {stable_mosaic.version = 11 : i64} {
  func.func @_gemm_kernel(%arg0: i32, %arg1: i32, %arg2: i32, %arg3: memref<256x512xbf16, #tpu.memory_space<vmem>>, %arg4: memref<512x256xbf16, #tpu.memory_space<vmem>>, %arg5: memref<1x256xf32, #tpu.memory_space<vmem>>, %arg6: memref<256x256xf32, #tpu.memory_space<vmem>>) attributes {dimension_semantics = [#tpu.dimension_semantics<parallel>, #tpu.dimension_semantics<parallel>, #tpu.dimension_semantics<arbitrary>], iteration_bounds = array<i64: 1, 1, 9>, scalar_prefetch = 0 : i64, scratch_operands = 0 : i64, tpu.core_type = #tpu.core_type<tc>, window_params = [{transform_indices = @transform_0, window_bounds = array<i64: 256, 512>}, {transform_indices = @transform_1, window_bounds = array<i64: 512, 256>}, {transform_indices = @transform_2, window_bounds = array<i64: 1, 256>}, {transform_indices = @transform_3, window_bounds = array<i64: 256, 256>}]} {
    %c0_i32 = arith.constant 0 : i32
    %0 = arith.cmpi eq, %arg2, %c0_i32 : i32
    %1 = arith.extui %0 : i1 to i32
    %c0_i32_0 = arith.constant 0 : i32
    %2 = arith.cmpi ne, %1, %c0_i32_0 : i32
    scf.if %2 {
      %cst_9 = arith.constant 0.000000e+00 : f32
      %12 = vector.broadcast %cst_9 : f32 to vector<256x256xf32>
      %c0_10 = arith.constant 0 : index
      %c0_11 = arith.constant 0 : index
      %13 = vector.load %arg6[%c0_10, %c0_11] : memref<256x256xf32, #tpu.memory_space<vmem>>, vector<256x256xf32>
      tpu.vector_store %arg6[%c0_10, %c0_11], %12 {strides = array<i32>} : memref<256x256xf32, #tpu.memory_space<vmem>>, vector<256x256xf32>,
    } else {
    }
    %c0 = arith.constant 0 : index
    %c0_1 = arith.constant 0 : index
    %3 = vector.load %arg6[%c0, %c0_1] : memref<256x256xf32, #tpu.memory_space<vmem>>, vector<256x256xf32>
    %c0_2 = arith.constant 0 : index
    %c0_3 = arith.constant 0 : index
    %4 = vector.load %arg3[%c0_2, %c0_3] : memref<256x512xbf16, #tpu.memory_space<vmem>>, vector<256x512xbf16>
    %c0_4 = arith.constant 0 : index
    %c0_5 = arith.constant 0 : index
    %5 = vector.load %arg4[%c0_4, %c0_5] : memref<512x256xbf16, #tpu.memory_space<vmem>>, vector<512x256xbf16>
    %cst = arith.constant dense<0.000000e+00> : vector<256x256xf32>
    %6 = tpu.matmul %4, %5, %cst {dimension_numbers = #tpu.dot_dimension_numbers<[1], [0], [0], [1], [0, 0, 1, 1], [], []>} : vector<256x512xbf16>, vector<512x256xbf16>, vector<256x256xf32> -> vector<256x256xf32>
    %7 = arith.addf %3, %6 : vector<256x256xf32>
    %c0_6 = arith.constant 0 : index
    %c0_7 = arith.constant 0 : index
    %8 = vector.load %arg6[%c0_6, %c0_7] : memref<256x256xf32, #tpu.memory_space<vmem>>, vector<256x256xf32>
    tpu.vector_store %arg6[%c0_6, %c0_7], %7 {strides = array<i32>} : memref<256x256xf32, #tpu.memory_space<vmem>>, vector<256x256xf32>,
    %c8_i32 = arith.constant 8 : i32
    %9 = arith.cmpi eq, %arg2, %c8_i32 : i32
    %10 = arith.extui %9 : i1 to i32
    %c0_i32_8 = arith.constant 0 : i32
    %11 = arith.cmpi ne, %10, %c0_i32_8 : i32
    scf.if %11 {
      %c0_9 = arith.constant 0 : index
      %c0_10 = arith.constant 0 : index
      %12 = vector.load %arg6[%c0_9, %c0_10] : memref<256x256xf32, #tpu.memory_space<vmem>>, vector<256x256xf32>
      %c0_11 = arith.constant 0 : index
      %c0_12 = arith.constant 0 : index
      %13 = vector.load %arg5[%c0_11, %c0_12] : memref<1x256xf32, #tpu.memory_space<vmem>>, vector<1x256xf32>
      %14 = vector.broadcast %13 : vector<1x256xf32> to vector<256x256xf32>
      %15 = arith.addf %12, %14 : vector<256x256xf32>
      %c0_13 = arith.constant 0 : index
      %c0_14 = arith.constant 0 : index
      %16 = vector.load %arg6[%c0_13, %c0_14] : memref<256x256xf32, #tpu.memory_space<vmem>>, vector<256x256xf32>
      tpu.vector_store %arg6[%c0_13, %c0_14], %15 {strides = array<i32>} : memref<256x256xf32, #tpu.memory_space<vmem>>, vector<256x256xf32>,
    } else {
    }
    return
  }
  func.func @transform_0(%arg0: i32, %arg1: i32, %arg2: i32) -> (i32, i32) {
    %c0_i32 = arith.constant 0 : i32
    return %arg0, %arg2 : i32, i32
  }
  func.func @transform_1(%arg0: i32, %arg1: i32, %arg2: i32) -> (i32, i32) {
    %c0_i32 = arith.constant 0 : i32
    return %arg2, %arg1 : i32, i32
  }
  func.func @transform_2(%arg0: i32, %arg1: i32, %arg2: i32) -> (i32, i32) {
    %c0_i32 = arith.constant 0 : i32
    %c0_i32_0 = arith.constant 0 : i32
    return %c0_i32, %arg1 : i32, i32
  }
  func.func @transform_3(%arg0: i32, %arg1: i32, %arg2: i32) -> (i32, i32) {
    %c0_i32 = arith.constant 0 : i32
    return %arg0, %arg1 : i32, i32
  }
}

</mosaic_0001>

<llo_original>
// kernel: tpu_custom_call.1
$region0: #{tpu_custom_call.1}
  #allocation0 [shape = 'u32[]', space=smem, size = 0x4, offset = 0x4, fixed_abs, tag = 'smem constant byte address 0x4 - core index']
  #allocation1 [shape = 'u32[144,128]{1,0:T(1,128)}', space=vmem, size = 0x12000, scoped, tag = 'internal scratch']
  %s0 = inlined_call_operand.hbm [shape: bf16[256,4608], index: 0, kind: input, shape index: {}]
  %s1 = inlined_call_operand.hbm [shape: bf16[4608,256], index: 1, kind: input, shape index: {}]
  %s2 = inlined_call_operand.hbm [shape: f32[1,256], index: 2, kind: input, shape index: {}]
  %s3 = inlined_call_operand.hbm [shape: f32[256,256], index: 3, kind: output, shape index: {}]
  %s4 = sld [smem:[#allocation0]]
  $region65: #{tpu_custom_call.1} parent=0
    _
  %s6 = ssub.s32 1, %s4
  %s7 = scalar_select 0, %s6, %s4
  $region1: #{tpu_custom_call.1} parent=0
    #allocation2 [shape = 'u8[524288]{0}', space=vmem, size = 0x80000, scoped, tag = 'input window, operand 0']
    #allocation3 [shape = 's32[2]{0}', space=sflag, size = 0x8, scoped, tag = 'scoped memory for tpu_custom_call.1']
    #allocation4 [shape = 's32[2]{0}', space=sflag, size = 0x8, scoped, tag = 'scoped memory for tpu_custom_call.1']
    #allocation5 [shape = 'u8[524288]{0}', space=vmem, size = 0x80000, scoped, tag = 'input window, operand 1']
    #allocation6 [shape = 's32[2]{0}', space=sflag, size = 0x8, scoped, tag = 'scoped memory for tpu_custom_call.1']
    #allocation7 [shape = 'u8[1024]{0}', space=vmem, size = 0x400, scoped, tag = 'input window, operand 2, single buffered']
    #allocation8 [shape = 'u8[262144]{0}', space=vmem, size = 0x40000, scoped, tag = 'output window, operand 0, single buffered']
    %8 = vsyncpa [#allocation3], 0
    %s9 = scalar_lea.sflag [#allocation3], 1
    %10 = vsyncpa %s9, 0
    %11 = vsyncpa [#allocation6], 0
    %s12 = scalar_lea.sflag [#allocation6], 1
    %13 = vsyncpa %s12, 0
    %14 = vsyncpa [#allocation4], 0
    loop: start=0, step=1, limit=11
    $region2: #{tpu_custom_call.1} parent=1 // loop_pre_header
      _
    $region3: #{tpu_custom_call.1} parent=1 // loop_header
      %s16 = sphi 0, %s20
      %p17 = scmp.ge.s32.totalorder %s16, 11
      %s23 = sphi 0, %s42
      %s24 = sphi 0, %s38
      %s25 = sphi 0, %s34
      %s26 = sphi 0, %s23
      %s27 = sphi 0, %s24
      %s28 = sphi 0, %s25
      %s29 = sphi 0, %s26
      %s30 = sphi 0, %s27
      %s31 = sphi 0, %s28
      %s47 = sphi 0, %s49
      %s50 = sphi 0, %s47
      %s51 = sphi 0, %s50
      %s67 = sphi 0, %s51
      %s75 = sphi 0, %s77
      %s78 = sphi 0, %s75
      %s79 = sphi 0, %s78
      %s95 = sphi 0, %s79
      %s101 = sphi 0, %s103
      %s104 = sphi 0, %s101
      %s105 = sphi 0, %s104
      %s121 = sphi 0, %s105
      %s129 = sphi 0, %s131
      %s132 = sphi 0, %s129
      %s133 = sphi 0, %s132
      %s149 = sphi 0, %s133
    $region4: #{tpu_custom_call.1} parent=1 // loop_header_branch
      %19 = sbr.rel (%p17) target = $region8
    $region5: #{tpu_custom_call.1} parent=1 // loop_body
      %s21 = ssub.s32 %s16, 1
      %s22 = ssub.s32 %s16, 2
      %s32 = sadd.s32 1, %s25
      %p33 = scmp.ge.s32.totalorder %s32, 9
      %s34 = scalar_select %p33, 0, %s32
      %s35 = sadd.s32 1, %s24
      %s36 = scalar_select %p33, %s35, %s24
      %p37 = scmp.ge.s32.totalorder %s36, 1
      %s38 = scalar_select %p37, 0, %s36
      %s39 = sadd.s32 1, %s23
      %s40 = scalar_select %p37, %s39, %s23
      %p41 = scmp.ge.s32.totalorder %s40, 1
      %s42 = scalar_select %p41, 0, %s40
      %s43 = ssub.s32 %s23, %s42
      %s44 = ssub.s32 %s25, %s34
      %s45 = sor.u32 %s43, %s44
      %p46 = scmp.eq.s32.totalorder %s45, 0
      %s48 = sadd.s32 %s47, 1
      %s49 = scalar_select %p46, %s47, %s48
      %p52 = pneg %p46
      %p53 = scmp.eq.s32.totalorder %s16, 8
      %p54 = por %p52, %p53
      %p55 = scmp.ne.s32.totalorder %s47, %s50
      %p56 = scmp.eq.s32.totalorder %s16, 0
      %p57 = por %p55, %p56
      %p58 = scmp.ne.s32.totalorder %s47, %s50
      %p59 = scmp.eq.s32.totalorder %s21, 8
      %p60 = por %p58, %p59
      %p61 = scmp.ne.s32.totalorder %s50, %s51
      %p62 = scmp.eq.s32.totalorder %s21, 0
      %p63 = por %p61, %p62
      %p64 = scmp.ne.s32.totalorder %s50, %s51
      %p65 = scmp.eq.s32.totalorder %s22, 8
      %p66 = por %p64, %p65
      %p68 = scmp.ne.s32.totalorder %s51, %s67
      %p69 = scmp.eq.s32.totalorder %s22, 0
      %p70 = por %p68, %p69
      %s71 = ssub.s32 %s25, %s34
      %s72 = ssub.s32 %s24, %s38
      %s73 = sor.u32 %s71, %s72
      %p74 = scmp.eq.s32.totalorder %s73, 0
      %s76 = sadd.s32 %s75, 1
      %s77 = scalar_select %p74, %s75, %s76
      %p80 = pneg %p74
      %p81 = scmp.eq.s32.totalorder %s16, 8
      %p82 = por %p80, %p81
      %p83 = scmp.ne.s32.totalorder %s75, %s78
      %p84 = scmp.eq.s32.totalorder %s16, 0
      %p85 = por %p83, %p84
      %p86 = scmp.ne.s32.totalorder %s75, %s78
      %p87 = scmp.eq.s32.totalorder %s21, 8
      %p88 = por %p86, %p87
      %p89 = scmp.ne.s32.totalorder %s78, %s79
      %p90 = scmp.eq.s32.totalorder %s21, 0
      %p91 = por %p89, %p90
      %p92 = scmp.ne.s32.totalorder %s78, %s79
      %p93 = scmp.eq.s32.totalorder %s22, 8
      %p94 = por %p92, %p93
      %p96 = scmp.ne.s32.totalorder %s79, %s95
      %p97 = scmp.eq.s32.totalorder %s22, 0
      %p98 = por %p96, %p97
      %s99 = ssub.s32 %s24, %s38
      %p100 = scmp.eq.s32.totalorder %s99, 0
      %s102 = sadd.s32 %s101, 1
      %s103 = scalar_select %p100, %s101, %s102
      %p106 = pneg %p100
      %p107 = scmp.eq.s32.totalorder %s16, 8
      %p108 = por %p106, %p107
      %p109 = scmp.ne.s32.totalorder %s101, %s104
      %p110 = scmp.eq.s32.totalorder %s16, 0
      %p111 = por %p109, %p110
      %p112 = scmp.ne.s32.totalorder %s101, %s104
      %p113 = scmp.eq.s32.totalorder %s21, 8
      %p114 = por %p112, %p113
      %p115 = scmp.ne.s32.totalorder %s104, %s105
      %p116 = scmp.eq.s32.totalorder %s21, 0
      %p117 = por %p115, %p116
      %p118 = scmp.ne.s32.totalorder %s104, %s105
      %p119 = scmp.eq.s32.totalorder %s22, 8
      %p120 = por %p118, %p119
      %p122 = scmp.ne.s32.totalorder %s105, %s121
      %p123 = scmp.eq.s32.totalorder %s22, 0
      %p124 = por %p122, %p123
      %s125 = ssub.s32 %s23, %s42
      %s126 = ssub.s32 %s24, %s38
      %s127 = sor.u32 %s125, %s126
      %p128 = scmp.eq.s32.totalorder %s127, 0
      %s130 = sadd.s32 %s129, 1
      %s131 = scalar_select %p128, %s129, %s130
      %p134 = pneg %p128
      %p135 = scmp.eq.s32.totalorder %s16, 8
      %p136 = por %p134, %p135
      %p137 = scmp.ne.s32.totalorder %s129, %s132
      %p138 = scmp.eq.s32.totalorder %s16, 0
      %p139 = por %p137, %p138
      %p140 = scmp.ne.s32.totalorder %s129, %s132
      %p141 = scmp.eq.s32.totalorder %s21, 8
      %p142 = por %p140, %p141
      %p143 = scmp.ne.s32.totalorder %s132, %s133
      %p144 = scmp.eq.s32.totalorder %s21, 0
      %p145 = por %p143, %p144
      %p146 = scmp.ne.s32.totalorder %s132, %s133
      %p147 = scmp.eq.s32.totalorder %s22, 8
      %p148 = por %p146, %p147
      %p150 = scmp.ne.s32.totalorder %s133, %s149
      %p151 = scmp.eq.s32.totalorder %s22, 0
      %p152 = por %p150, %p151
      %p153 = scmp.le.s32.totalorder 1, %s16
      %p154 = scmp.lt.s32.totalorder %s16, 10
      %p155 = pnand %p153, %p154
      %p156 = pneg %p155
      // Predicated region
      $region9: #{tpu_custom_call.1} parent=5 // pred_check
        _
      $region10: #{tpu_custom_call.1} parent=5 // pred_check_branch
        %158 = sbr.rel (%p155) target = $region12
      $region11: #{tpu_custom_call.1} parent=5 // pred_region
        %s159 = ssub.s32 %s16, 1
        // Predicated region
        $region13: #{tpu_custom_call.1} parent=11 // pred_check
          %p160 = pneg %p117
        $region14: #{tpu_custom_call.1} parent=11 // pred_check_branch
          %162 = sbr.rel (%p160) target = $region16
        $region15: #{tpu_custom_call.1} parent=11 // pred_region
          %s163 = smul.u32 2, %s27
          %s165 = ssub.s32 32, 32
          %166 = vsyncadd [#allocation6], %s165
          %s167 = smul.addr %s163, 16
          %s168 = scalar_lea.hbm %s2, %s167
          %s170 = sshll.u32 [#allocation7], 4
          %s171 = int_to_ptr.vmem [resolvable:$true] %s170
          %173 = dma.hbm_to_vmem [thread:$0]  %s168, 32, %s171, [#allocation6]
        $region16: #{tpu_custom_call.1} parent=11 // pred_fallthru
          _
      $region12: #{tpu_custom_call.1} parent=5 // pred_fallthru
        _
      %p174 = scmp.lt.s32.totalorder %s16, 9
      // Predicated region
      $region17: #{tpu_custom_call.1} parent=5 // pred_check
        %p175 = pneg %p174
      $region18: #{tpu_custom_call.1} parent=5 // pred_check_branch
        %177 = sbr.rel (%p175) target = $region20
      $region19: #{tpu_custom_call.1} parent=5 // pred_region
        // Predicated region
        $region21: #{tpu_custom_call.1} parent=19 // pred_check
          %p178 = pneg %p57
        $region22: #{tpu_custom_call.1} parent=19 // pred_check_branch
          %180 = sbr.rel (%p178) target = $region24
        $region23: #{tpu_custom_call.1} parent=19 // pred_region
          %s181 = sand.u32 %s47, 1
          %s182 = scalar_lea.sflag [#allocation3], %s181
          %s183 = sand.u32 %s47, 1
          %s184 = smul.addr %s183, 512
          %s185 = scalar_lea.vmem [#allocation2], %s184
          %s186 = smul.u32 32, %s23
          %s187 = smul.u32 4, %s25
          %s189 = ssub.s32 8192, 8192
          %190 = vsyncadd %s182, %s189
          %s191 = smul.addr %s186, 36
          %s192 = sadd.s32 %s187, %s191
          %s193 = smul.addr %s192, 64
          %s194 = scalar_lea.hbm %s0, %s193
          %s195 = sshll.u32 %s185, 4
          %s196 = int_to_ptr.vmem [resolvable:$true] %s195
          %201 = dma.hbm_to_vmem [thread:$0]  %s194, 8192, %s196, %s182, 2304, 256, 16
        $region24: #{tpu_custom_call.1} parent=19 // pred_fallthru
          _
        // Predicated region
        $region25: #{tpu_custom_call.1} parent=19 // pred_check
          %p202 = pneg %p85
        $region26: #{tpu_custom_call.1} parent=19 // pred_check_branch
          %204 = sbr.rel (%p202) target = $region28
        $region27: #{tpu_custom_call.1} parent=19 // pred_region
          %s205 = sand.u32 %s16, 1
          %s206 = scalar_lea.sflag [#allocation6], %s205
          %s207 = sand.u32 %s75, 1
          %s208 = smul.addr %s207, 512
          %s209 = scalar_lea.vmem [#allocation5], %s208
          %s210 = smul.u32 64, %s25
          %s211 = smul.u32 2, %s24
          %s213 = ssub.s32 8192, 8192
          %214 = vsyncadd %s206, %s213
          %s215 = smul.addr %s210, 2
          %s216 = sadd.s32 %s211, %s215
          %s217 = smul.addr %s216, 64
          %s218 = scalar_lea.hbm %s1, %s217
          %s219 = sshll.u32 %s209, 4
          %s220 = int_to_ptr.vmem [resolvable:$true] %s219
          %225 = dma.hbm_to_vmem [thread:$0]  %s218, 8192, %s220, %s206, 128, 128, 8
        $region28: #{tpu_custom_call.1} parent=19 // pred_fallthru
          _
      $region20: #{tpu_custom_call.1} parent=5 // pred_fallthru
        _
      %p226 = scmp.le.s32.totalorder 1, %s16
      %p227 = scmp.lt.s32.totalorder %s16, 10
      %p228 = pnand %p226, %p227
      %p229 = pneg %p228
      // Predicated region
      $region29: #{tpu_custom_call.1} parent=5 // pred_check
        _
      $region30: #{tpu_custom_call.1} parent=5 // pred_check_branch
        %231 = sbr.rel (%p228) target = $region32
      $region31: #{tpu_custom_call.1} parent=5 // pred_region
        %s232 = ssub.s32 %s16, 1
        %s233 = sand.u32 %s50, 1
        %s234 = scalar_lea.sflag [#allocation3], %s233
        %s235 = sand.u32 %s50, 1
        %s236 = smul.addr %s235, 512
        %s237 = scalar_lea.vmem [#allocation2], %s236
        // Predicated region
        $region33: #{tpu_custom_call.1} parent=31 // pred_check
          %p238 = pneg %p63
        $region34: #{tpu_custom_call.1} parent=31 // pred_check_branch
          %240 = sbr.rel (%p238) target = $region36
        $region35: #{tpu_custom_call.1} parent=31 // pred_region
          %241 = dma.done %s234, 8192
        $region36: #{tpu_custom_call.1} parent=31 // pred_fallthru
          _
        %s242 = sand.u32 %s21, 1
        %s243 = scalar_lea.sflag [#allocation6], %s242
        %s244 = sand.u32 %s78, 1
        %s245 = smul.addr %s244, 512
        %s246 = scalar_lea.vmem [#allocation5], %s245
        // Predicated region
        $region37: #{tpu_custom_call.1} parent=31 // pred_check
          %p247 = pneg %p91
        $region38: #{tpu_custom_call.1} parent=31 // pred_check_branch
          %249 = sbr.rel (%p247) target = $region40
        $region39: #{tpu_custom_call.1} parent=31 // pred_region
          %250 = dma.done %s243, 8192
        $region40: #{tpu_custom_call.1} parent=31 // pred_fallthru
          _
        // Predicated region
        $region41: #{tpu_custom_call.1} parent=31 // pred_check
          %p251 = pneg %p117
        $region42: #{tpu_custom_call.1} parent=31 // pred_check_branch
          %253 = sbr.rel (%p251) target = $region44
        $region43: #{tpu_custom_call.1} parent=31 // pred_region
          %254 = dma.done [#allocation6], 32
        $region44: #{tpu_custom_call.1} parent=31 // pred_fallthru
          _
        %s255 = sand.u32 %s50, 1
        %s256 = scalar_lea.sflag [#allocation3], %s255
        %s257 = sand.u32 %s50, 1
        %s258 = smul.addr %s257, 512
        %s259 = scalar_lea.vmem [#allocation2], %s258
        %p260 = pneg %p63
        %p261 = pneg %p60
        %s262 = sand.u32 %s21, 1
        %s263 = scalar_lea.sflag [#allocation6], %s262
        %s264 = sand.u32 %s78, 1
        %s265 = smul.addr %s264, 512
        %s266 = scalar_lea.vmem [#allocation5], %s265
        %p267 = pneg %p91
        %p268 = pneg %p88
        %p269 = pneg %p117
        %p270 = pneg %p114
        %p271 = pneg %p145
        %p272 = pneg %p142
        %s273 = smul.u32 32, %s26
        %s274 = smul.u32 4, %s28
        %s275 = smul.u32 64, %s28
        %s276 = smul.u32 2, %s27
        %s277 = smul.u32 2, %s27
        %s278 = smul.u32 32, %s26
        %s279 = smul.u32 2, %s27
        %p280 = scmp.eq.s32.totalorder %s28, 0
        // Predicated region
        $region45: #{tpu_custom_call.1} parent=31 // pred_check
          %p281 = pneg %p280
        $region46: #{tpu_custom_call.1} parent=31 // pred_check_branch
          %283 = sbr.rel (%p281) target = $region48
        $region47: #{tpu_custom_call.1} parent=31 // pred_region
          %284 = vst [vmem:[#allocation8] sm:$0xff] 0.0
          %285 = vst [vmem:[#allocation8 + $0x8] sm:$0xff] 0.0
          %286 = vst [vmem:[#allocation8 + $0x10] sm:$0xff] 0.0
          %287 = vst [vmem:[#allocation8 + $0x18] sm:$0xff] 0.0
          %288 = vst [vmem:[#allocation8 + $0x20] sm:$0xff] 0.0
          %289 = vst [vmem:[#allocation8 + $0x28] sm:$0xff] 0.0
          %290 = vst [vmem:[#allocation8 + $0x30] sm:$0xff] 0.0
          %291 = vst [vmem:[#allocation8 + $0x38] sm:$0xff] 0.0
          %292 = vst [vmem:[#allocation8 + $0x40] sm:$0xff] 0.0
          %293 = vst [vmem:[#allocation8 + $0x48] sm:$0xff] 0.0
          %294 = vst [vmem:[#allocation8 + $0x50] sm:$0xff] 0.0
          %295 = vst [vmem:[#allocation8 + $0x58] sm:$0xff] 0.0
          %296 = vst [vmem:[#allocation8 + $0x60] sm:$0xff] 0.0
          %297 = vst [vmem:[#allocation8 + $0x68] sm:$0xff] 0.0
          %298 = vst [vmem:[#allocation8 + $0x70] sm:$0xff] 0.0
          %299 = vst [vmem:[#allocation8 + $0x78] sm:$0xff] 0.0
          %300 = vst [vmem:[#allocation8 + $0x80] sm:$0xff] 0.0
          %301 = vst [vmem:[#allocation8 + $0x88] sm:$0xff] 0.0
          %302 = vst [vmem:[#allocation8 + $0x90] sm:$0xff] 0.0
          %303 = vst [vmem:[#allocation8 + $0x98] sm:$0xff] 0.0
          %304 = vst [vmem:[#allocation8 + $0xa0] sm:$0xff] 0.0
          %305 = vst [vmem:[#allocation8 + $0xa8] sm:$0xff] 0.0
          %306 = vst [vmem:[#allocation8 + $0xb0] sm:$0xff] 0.0
          %307 = vst [vmem:[#allocation8 + $0xb8] sm:$0xff] 0.0
          %308 = vst [vmem:[#allocation8 + $0xc0] sm:$0xff] 0.0
          %309 = vst [vmem:[#allocation8 + $0xc8] sm:$0xff] 0.0
          %310 = vst [vmem:[#allocation8 + $0xd0] sm:$0xff] 0.0
          %311 = vst [vmem:[#allocation8 + $0xd8] sm:$0xff] 0.0
          %312 = vst [vmem:[#allocation8 + $0xe0] sm:$0xff] 0.0
          %313 = vst [vmem:[#allocation8 + $0xe8] sm:$0xff] 0.0
          %314 = vst [vmem:[#allocation8 + $0xf0] sm:$0xff] 0.0
          %315 = vst [vmem:[#allocation8 + $0xf8] sm:$0xff] 0.0
          %316 = vst [vmem:[#allocation8 + $0x100] sm:$0xff] 0.0
          %317 = vst [vmem:[#allocation8 + $0x108] sm:$0xff] 0.0
          %318 = vst [vmem:[#allocation8 + $0x110] sm:$0xff] 0.0
          %319 = vst [vmem:[#allocation8 + $0x118] sm:$0xff] 0.0
          %320 = vst [vmem:[#allocation8 + $0x120] sm:$0xff] 0.0
          %321 = vst [vmem:[#allocation8 + $0x128] sm:$0xff] 0.0
          %322 = vst [vmem:[#allocation8 + $0x130] sm:$0xff] 0.0
          %323 = vst [vmem:[#allocation8 + $0x138] sm:$0xff] 0.0
          %324 = vst [vmem:[#allocation8 + $0x140] sm:$0xff] 0.0
          %325 = vst [vmem:[#allocation8 + $0x148] sm:$0xff] 0.0
          %326 = vst [vmem:[#allocation8 + $0x150] sm:$0xff] 0.0
          %327 = vst [vmem:[#allocation8 + $0x158] sm:$0xff] 0.0
          %328 = vst [vmem:[#allocation8 + $0x160] sm:$0xff] 0.0
          %329 = vst [vmem:[#allocation8 + $0x168] sm:$0xff] 0.0
          %330 = vst [vmem:[#allocation8 + $0x170] sm:$0xff] 0.0
          %331 = vst [vmem:[#allocation8 + $0x178] sm:$0xff] 0.0
          %332 = vst [vmem:[#allocation8 + $0x180] sm:$0xff] 0.0
          %333 = vst [vmem:[#allocation8 + $0x188] sm:$0xff] 0.0
          %334 = vst [vmem:[#allocation8 + $0x190] sm:$0xff] 0.0
          %335 = vst [vmem:[#allocation8 + $0x198] sm:$0xff] 0.0
          %336 = vst [vmem:[#allocation8 + $0x1a0] sm:$0xff] 0.0
          %337 = vst [vmem:[#allocation8 + $0x1a8] sm:$0xff] 0.0
          %338 = vst [vmem:[#allocation8 + $0x1b0] sm:$0xff] 0.0
          %339 = vst [vmem:[#allocation8 + $0x1b8] sm:$0xff] 0.0
          %340 = vst [vmem:[#allocation8 + $0x1c0] sm:$0xff] 0.0
          %341 = vst [vmem:[#allocation8 + $0x1c8] sm:$0xff] 0.0
          %342 = vst [vmem:[#allocation8 + $0x1d0] sm:$0xff] 0.0
          %343 = vst [vmem:[#allocation8 + $0x1d8] sm:$0xff] 0.0
          %344 = vst [vmem:[#allocation8 + $0x1e0] sm:$0xff] 0.0
          %345 = vst [vmem:[#allocation8 + $0x1e8] sm:$0xff] 0.0
          %346 = vst [vmem:[#allocation8 + $0x1f0] sm:$0xff] 0.0
          %347 = vst [vmem:[#allocation8 + $0x1f8] sm:$0xff] 0.0
        $region48: #{tpu_custom_call.1} parent=31 // pred_fallthru
          _
        %v348 = vld [vmem:[#allocation8] sm:$0xff]
        %v349 = vld [vmem:[#allocation8 + $0x8] sm:$0xff]
        %v350 = vld [vmem:[#allocation8 + $0x10] sm:$0xff]
        %v351 = vld [vmem:[#allocation8 + $0x18] sm:$0xff]
        %v352 = vld [vmem:[#allocation8 + $0x20] sm:$0xff]
        %v353 = vld [vmem:[#allocation8 + $0x28] sm:$0xff]
        %v354 = vld [vmem:[#allocation8 + $0x30] sm:$0xff]
        %v355 = vld [vmem:[#allocation8 + $0x38] sm:$0xff]
        %v356 = vld [vmem:[#allocation8 + $0x40] sm:$0xff]
        %v357 = vld [vmem:[#allocation8 + $0x48] sm:$0xff]
        %v358 = vld [vmem:[#allocation8 + $0x50] sm:$0xff]
        %v359 = vld [vmem:[#allocation8 + $0x58] sm:$0xff]
        %v360 = vld [vmem:[#allocation8 + $0x60] sm:$0xff]
        %v361 = vld [vmem:[#allocation8 + $0x68] sm:$0xff]
        %v362 = vld [vmem:[#allocation8 + $0x70] sm:$0xff]
        %v363 = vld [vmem:[#allocation8 + $0x78] sm:$0xff]
        %v364 = vld [vmem:[#allocation8 + $0x80] sm:$0xff]
        %v365 = vld [vmem:[#allocation8 + $0x88] sm:$0xff]
        %v366 = vld [vmem:[#allocation8 + $0x90] sm:$0xff]
        %v367 = vld [vmem:[#allocation8 + $0x98] sm:$0xff]
        %v368 = vld [vmem:[#allocation8 + $0xa0] sm:$0xff]
        %v369 = vld [vmem:[#allocation8 + $0xa8] sm:$0xff]
        %v370 = vld [vmem:[#allocation8 + $0xb0] sm:$0xff]
        %v371 = vld [vmem:[#allocation8 + $0xb8] sm:$0xff]
        %v372 = vld [vmem:[#allocation8 + $0xc0] sm:$0xff]
        %v373 = vld [vmem:[#allocation8 + $0xc8] sm:$0xff]
        %v374 = vld [vmem:[#allocation8 + $0xd0] sm:$0xff]
        %v375 = vld [vmem:[#allocation8 + $0xd8] sm:$0xff]
        %v376 = vld [vmem:[#allocation8 + $0xe0] sm:$0xff]
        %v377 = vld [vmem:[#allocation8 + $0xe8] sm:$0xff]
        %v378 = vld [vmem:[#allocation8 + $0xf0] sm:$0xff]
        %v379 = vld [vmem:[#allocation8 + $0xf8] sm:$0xff]
        %v380 = vld [vmem:[#allocation8 + $0x100] sm:$0xff]
        %v381 = vld [vmem:[#allocation8 + $0x108] sm:$0xff]
        %v382 = vld [vmem:[#allocation8 + $0x110] sm:$0xff]
        %v383 = vld [vmem:[#allocation8 + $0x118] sm:$0xff]
        %v384 = vld [vmem:[#allocation8 + $0x120] sm:$0xff]
        %v385 = vld [vmem:[#allocation8 + $0x128] sm:$0xff]
        %v386 = vld [vmem:[#allocation8 + $0x130] sm:$0xff]
        %v387 = vld [vmem:[#allocation8 + $0x138] sm:$0xff]
        %v388 = vld [vmem:[#allocation8 + $0x140] sm:$0xff]
        %v389 = vld [vmem:[#allocation8 + $0x148] sm:$0xff]
        %v390 = vld [vmem:[#allocation8 + $0x150] sm:$0xff]
        %v391 = vld [vmem:[#allocation8 + $0x158] sm:$0xff]
        %v392 = vld [vmem:[#allocation8 + $0x160] sm:$0xff]
        %v393 = vld [vmem:[#allocation8 + $0x168] sm:$0xff]
        %v394 = vld [vmem:[#allocation8 + $0x170] sm:$0xff]
        %v395 = vld [vmem:[#allocation8 + $0x178] sm:$0xff]
        %v396 = vld [vmem:[#allocation8 + $0x180] sm:$0xff]
        %v397 = vld [vmem:[#allocation8 + $0x188] sm:$0xff]
        %v398 = vld [vmem:[#allocation8 + $0x190] sm:$0xff]
        %v399 = vld [vmem:[#allocation8 + $0x198] sm:$0xff]
        %v400 = vld [vmem:[#allocation8 + $0x1a0] sm:$0xff]
        %v401 = vld [vmem:[#allocation8 + $0x1a8] sm:$0xff]
        %v402 = vld [vmem:[#allocation8 + $0x1b0] sm:$0xff]
        %v403 = vld [vmem:[#allocation8 + $0x1b8] sm:$0xff]
        %v404 = vld [vmem:[#allocation8 + $0x1c0] sm:$0xff]
        %v405 = vld [vmem:[#allocation8 + $0x1c8] sm:$0xff]
        %v406 = vld [vmem:[#allocation8 + $0x1d0] sm:$0xff]
        %v407 = vld [vmem:[#allocation8 + $0x1d8] sm:$0xff]
        %v408 = vld [vmem:[#allocation8 + $0x1e0] sm:$0xff]
        %v409 = vld [vmem:[#allocation8 + $0x1e8] sm:$0xff]
        %v410 = vld [vmem:[#allocation8 + $0x1f0] sm:$0xff]
        %v411 = vld [vmem:[#allocation8 + $0x1f8] sm:$0xff]
        %v412 = vld [vmem:[%s237] sm:$0xff]
        %v413 = vld [vmem:[%s237 + $0x8] sm:$0xff]
        %v414 = vld [vmem:[%s237 + $0x10] sm:$0xff]
        %v415 = vld [vmem:[%s237 + $0x18] sm:$0xff]
        %v416 = vld [vmem:[%s237 + $0x20] sm:$0xff]
        %v417 = vld [vmem:[%s237 + $0x28] sm:$0xff]
        %v418 = vld [vmem:[%s237 + $0x30] sm:$0xff]
        %v419 = vld [vmem:[%s237 + $0x38] sm:$0xff]
        %v420 = vld [vmem:[%s237 + $0x40] sm:$0xff]
        %v421 = vld [vmem:[%s237 + $0x48] sm:$0xff]
        %v422 = vld [vmem:[%s237 + $0x50] sm:$0xff]
        %v423 = vld [vmem:[%s237 + $0x58] sm:$0xff]
        %v424 = vld [vmem:[%s237 + $0x60] sm:$0xff]
        %v425 = vld [vmem:[%s237 + $0x68] sm:$0xff]
        %v426 = vld [vmem:[%s237 + $0x70] sm:$0xff]
        %v427 = vld [vmem:[%s237 + $0x78] sm:$0xff]
        %v428 = vld [vmem:[%s237 + $0x80] sm:$0xff]
        %v429 = vld [vmem:[%s237 + $0x88] sm:$0xff]
        %v430 = vld [vmem:[%s237 + $0x90] sm:$0xff]
        %v431 = vld [vmem:[%s237 + $0x98] sm:$0xff]
        %v432 = vld [vmem:[%s237 + $0xa0] sm:$0xff]
        %v433 = vld [vmem:[%s237 + $0xa8] sm:$0xff]
        %v434 = vld [vmem:[%s237 + $0xb0] sm:$0xff]
        %v435 = vld [vmem:[%s237 + $0xb8] sm:$0xff]
        %v436 = vld [vmem:[%s237 + $0xc0] sm:$0xff]
        %v437 = vld [vmem:[%s237 + $0xc8] sm:$0xff]
        %v438 = vld [vmem:[%s237 + $0xd0] sm:$0xff]
        %v439 = vld [vmem:[%s237 + $0xd8] sm:$0xff]
        %v440 = vld [vmem:[%s237 + $0xe0] sm:$0xff]
        %v441 = vld [vmem:[%s237 + $0xe8] sm:$0xff]
        %v442 = vld [vmem:[%s237 + $0xf0] sm:$0xff]
        %v443 = vld [vmem:[%s237 + $0xf8] sm:$0xff]
        %v444 = vld [vmem:[%s237 + $0x100] sm:$0xff]
        %v445 = vld [vmem:[%s237 + $0x108] sm:$0xff]
        %v446 = vld [vmem:[%s237 + $0x110] sm:$0xff]
        %v447 = vld [vmem:[%s237 + $0x118] sm:$0xff]
        %v448 = vld [vmem:[%s237 + $0x120] sm:$0xff]
        %v449 = vld [vmem:[%s237 + $0x128] sm:$0xff]
        %v450 = vld [vmem:[%s237 + $0x130] sm:$0xff]
        %v451 = vld [vmem:[%s237 + $0x138] sm:$0xff]
        %v452 = vld [vmem:[%s237 + $0x140] sm:$0xff]
        %v453 = vld [vmem:[%s237 + $0x148] sm:$0xff]
        %v454 = vld [vmem:[%s237 + $0x150] sm:$0xff]
        %v455 = vld [vmem:[%s237 + $0x158] sm:$0xff]
        %v456 = vld [vmem:[%s237 + $0x160] sm:$0xff]
        %v457 = vld [vmem:[%s237 + $0x168] sm:$0xff]
        %v458 = vld [vmem:[%s237 + $0x170] sm:$0xff]
        %v459 = vld [vmem:[%s237 + $0x178] sm:$0xff]
        %v460 = vld [vmem:[%s237 + $0x180] sm:$0xff]
        %v461 = vld [vmem:[%s237 + $0x188] sm:$0xff]
        %v462 = vld [vmem:[%s237 + $0x190] sm:$0xff]
        %v463 = vld [vmem:[%s237 + $0x198] sm:$0xff]
        %v464 = vld [vmem:[%s237 + $0x1a0] sm:$0xff]
        %v465 = vld [vmem:[%s237 + $0x1a8] sm:$0xff]
        %v466 = vld [vmem:[%s237 + $0x1b0] sm:$0xff]
        %v467 = vld [vmem:[%s237 + $0x1b8] sm:$0xff]
        %v468 = vld [vmem:[%s237 + $0x1c0] sm:$0xff]
        %v469 = vld [vmem:[%s237 + $0x1c8] sm:$0xff]
        %v470 = vld [vmem:[%s237 + $0x1d0] sm:$0xff]
        %v471 = vld [vmem:[%s237 + $0x1d8] sm:$0xff]
        %v472 = vld [vmem:[%s237 + $0x1e0] sm:$0xff]
        %v473 = vld [vmem:[%s237 + $0x1e8] sm:$0xff]
        %v474 = vld [vmem:[%s237 + $0x1f0] sm:$0xff]
        %v475 = vld [vmem:[%s237 + $0x1f8] sm:$0xff]
        %v476 = vld [vmem:[%s246] sm:$0xff]
        %v477 = vld [vmem:[%s246 + $0x8] sm:$0xff]
        %v478 = vld [vmem:[%s246 + $0x10] sm:$0xff]
        %v479 = vld [vmem:[%s246 + $0x18] sm:$0xff]
        %v480 = vld [vmem:[%s246 + $0x20] sm:$0xff]
        %v481 = vld [vmem:[%s246 + $0x28] sm:$0xff]
        %v482 = vld [vmem:[%s246 + $0x30] sm:$0xff]
        %v483 = vld [vmem:[%s246 + $0x38] sm:$0xff]
        %v484 = vld [vmem:[%s246 + $0x40] sm:$0xff]
        %v485 = vld [vmem:[%s246 + $0x48] sm:$0xff]
        %v486 = vld [vmem:[%s246 + $0x50] sm:$0xff]
        %v487 = vld [vmem:[%s246 + $0x58] sm:$0xff]
        %v488 = vld [vmem:[%s246 + $0x60] sm:$0xff]
        %v489 = vld [vmem:[%s246 + $0x68] sm:$0xff]
        %v490 = vld [vmem:[%s246 + $0x70] sm:$0xff]
        %v491 = vld [vmem:[%s246 + $0x78] sm:$0xff]
        %v492 = vld [vmem:[%s246 + $0x80] sm:$0xff]
        %v493 = vld [vmem:[%s246 + $0x88] sm:$0xff]
        %v494 = vld [vmem:[%s246 + $0x90] sm:$0xff]
        %v495 = vld [vmem:[%s246 + $0x98] sm:$0xff]
        %v496 = vld [vmem:[%s246 + $0xa0] sm:$0xff]
        %v497 = vld [vmem:[%s246 + $0xa8] sm:$0xff]
        %v498 = vld [vmem:[%s246 + $0xb0] sm:$0xff]
        %v499 = vld [vmem:[%s246 + $0xb8] sm:$0xff]
        %v500 = vld [vmem:[%s246 + $0xc0] sm:$0xff]
        %v501 = vld [vmem:[%s246 + $0xc8] sm:$0xff]
        %v502 = vld [vmem:[%s246 + $0xd0] sm:$0xff]
        %v503 = vld [vmem:[%s246 + $0xd8] sm:$0xff]
        %v504 = vld [vmem:[%s246 + $0xe0] sm:$0xff]
        %v505 = vld [vmem:[%s246 + $0xe8] sm:$0xff]
        %v506 = vld [vmem:[%s246 + $0xf0] sm:$0xff]
        %v507 = vld [vmem:[%s246 + $0xf8] sm:$0xff]
        %v508 = vld [vmem:[%s246 + $0x100] sm:$0xff]
        %v509 = vld [vmem:[%s246 + $0x108] sm:$0xff]
        %v510 = vld [vmem:[%s246 + $0x110] sm:$0xff]
        %v511 = vld [vmem:[%s246 + $0x118] sm:$0xff]
        %v512 = vld [vmem:[%s246 + $0x120] sm:$0xff]
        %v513 = vld [vmem:[%s246 + $0x128] sm:$0xff]
        %v514 = vld [vmem:[%s246 + $0x130] sm:$0xff]
        %v515 = vld [vmem:[%s246 + $0x138] sm:$0xff]
        %v516 = vld [vmem:[%s246 + $0x140] sm:$0xff]
        %v517 = vld [vmem:[%s246 + $0x148] sm:$0xff]
        %v518 = vld [vmem:[%s246 + $0x150] sm:$0xff]
        %v519 = vld [vmem:[%s246 + $0x158] sm:$0xff]
        %v520 = vld [vmem:[%s246 + $0x160] sm:$0xff]
        %v521 = vld [vmem:[%s246 + $0x168] sm:$0xff]
        %v522 = vld [vmem:[%s246 + $0x170] sm:$0xff]
        %v523 = vld [vmem:[%s246 + $0x178] sm:$0xff]
        %v524 = vld [vmem:[%s246 + $0x180] sm:$0xff]
        %v525 = vld [vmem:[%s246 + $0x188] sm:$0xff]
        %v526 = vld [vmem:[%s246 + $0x190] sm:$0xff]
        %v527 = vld [vmem:[%s246 + $0x198] sm:$0xff]
        %v528 = vld [vmem:[%s246 + $0x1a0] sm:$0xff]
        %v529 = vld [vmem:[%s246 + $0x1a8] sm:$0xff]
        %v530 = vld [vmem:[%s246 + $0x1b0] sm:$0xff]
        %v531 = vld [vmem:[%s246 + $0x1b8] sm:$0xff]
        %v532 = vld [vmem:[%s246 + $0x1c0] sm:$0xff]
        %v533 = vld [vmem:[%s246 + $0x1c8] sm:$0xff]
        %v534 = vld [vmem:[%s246 + $0x1d0] sm:$0xff]
        %v535 = vld [vmem:[%s246 + $0x1d8] sm:$0xff]
        %v536 = vld [vmem:[%s246 + $0x1e0] sm:$0xff]
        %v537 = vld [vmem:[%s246 + $0x1e8] sm:$0xff]
        %v538 = vld [vmem:[%s246 + $0x1f0] sm:$0xff]
        %v539 = vld [vmem:[%s246 + $0x1f8] sm:$0xff]
        %v604 = vunpack.c.l.b16 %v412
        %v605 = vunpack.c.h.b16 %v412
        %v606 = vunpack.c.l.b16 %v413
        %v607 = vunpack.c.h.b16 %v413
        %v608 = vunpack.c.l.b16 %v414
        %v609 = vunpack.c.h.b16 %v414
        %v610 = vunpack.c.l.b16 %v415
        %v611 = vunpack.c.h.b16 %v415
        %v612 = vunpack.c.l.b16 %v416
        %v613 = vunpack.c.h.b16 %v416
        %v614 = vunpack.c.l.b16 %v417
        %v615 = vunpack.c.h.b16 %v417
        %v616 = vunpack.c.l.b16 %v418
        %v617 = vunpack.c.h.b16 %v418
        %v618 = vunpack.c.l.b16 %v419
        %v619 = vunpack.c.h.b16 %v419
        %v620 = vunpack.c.l.b16 %v420
        %v621 = vunpack.c.h.b16 %v420
        %v622 = vunpack.c.l.b16 %v421
        %v623 = vunpack.c.h.b16 %v421
        %v624 = vunpack.c.l.b16 %v422
        %v625 = vunpack.c.h.b16 %v422
        %v626 = vunpack.c.l.b16 %v423
        %v627 = vunpack.c.h.b16 %v423
        %v628 = vunpack.c.l.b16 %v424
        %v629 = vunpack.c.h.b16 %v424
        %v630 = vunpack.c.l.b16 %v425
        %v631 = vunpack.c.h.b16 %v425
        %v632 = vunpack.c.l.b16 %v426
        %v633 = vunpack.c.h.b16 %v426
        %v634 = vunpack.c.l.b16 %v427
        %v635 = vunpack.c.h.b16 %v427
        %v636 = vunpack.c.l.b16 %v428
        %v637 = vunpack.c.h.b16 %v428
        %v638 = vunpack.c.l.b16 %v429
        %v639 = vunpack.c.h.b16 %v429
        %v640 = vunpack.c.l.b16 %v430
        %v641 = vunpack.c.h.b16 %v430
        %v642 = vunpack.c.l.b16 %v431
        %v643 = vunpack.c.h.b16 %v431
        %v644 = vunpack.c.l.b16 %v432
        %v645 = vunpack.c.h.b16 %v432
        %v646 = vunpack.c.l.b16 %v433
        %v647 = vunpack.c.h.b16 %v433
        %v648 = vunpack.c.l.b16 %v434
        %v649 = vunpack.c.h.b16 %v434
        %v650 = vunpack.c.l.b16 %v435
        %v651 = vunpack.c.h.b16 %v435
        %v652 = vunpack.c.l.b16 %v436
        %v653 = vunpack.c.h.b16 %v436
        %v654 = vunpack.c.l.b16 %v437
        %v655 = vunpack.c.h.b16 %v437
        %v656 = vunpack.c.l.b16 %v438
        %v657 = vunpack.c.h.b16 %v438
        %v658 = vunpack.c.l.b16 %v439
        %v659 = vunpack.c.h.b16 %v439
        %v660 = vunpack.c.l.b16 %v440
        %v661 = vunpack.c.h.b16 %v440
        %v662 = vunpack.c.l.b16 %v441
        %v663 = vunpack.c.h.b16 %v441
        %v664 = vunpack.c.l.b16 %v442
        %v665 = vunpack.c.h.b16 %v442
        %v666 = vunpack.c.l.b16 %v443
        %v667 = vunpack.c.h.b16 %v443
        %v668 = vunpack.c.l.b16 %v444
        %v669 = vunpack.c.h.b16 %v444
        %v670 = vunpack.c.l.b16 %v445
        %v671 = vunpack.c.h.b16 %v445
        %v672 = vunpack.c.l.b16 %v446
        %v673 = vunpack.c.h.b16 %v446
        %v674 = vunpack.c.l.b16 %v447
        %v675 = vunpack.c.h.b16 %v447
        %v676 = vunpack.c.l.b16 %v448
        %v677 = vunpack.c.h.b16 %v448
        %v678 = vunpack.c.l.b16 %v449
        %v679 = vunpack.c.h.b16 %v449
        %v680 = vunpack.c.l.b16 %v450
        %v681 = vunpack.c.h.b16 %v450
        %v682 = vunpack.c.l.b16 %v451
        %v683 = vunpack.c.h.b16 %v451
        %v684 = vunpack.c.l.b16 %v452
        %v685 = vunpack.c.h.b16 %v452
        %v686 = vunpack.c.l.b16 %v453
        %v687 = vunpack.c.h.b16 %v453
        %v688 = vunpack.c.l.b16 %v454
        %v689 = vunpack.c.h.b16 %v454
        %v690 = vunpack.c.l.b16 %v455
        %v691 = vunpack.c.h.b16 %v455
        %v692 = vunpack.c.l.b16 %v456
        %v693 = vunpack.c.h.b16 %v456
        %v694 = vunpack.c.l.b16 %v457
        %v695 = vunpack.c.h.b16 %v457
        %v696 = vunpack.c.l.b16 %v458
        %v697 = vunpack.c.h.b16 %v458
        %v698 = vunpack.c.l.b16 %v459
        %v699 = vunpack.c.h.b16 %v459
        %v700 = vunpack.c.l.b16 %v460
        %v701 = vunpack.c.h.b16 %v460
        %v702 = vunpack.c.l.b16 %v461
        %v703 = vunpack.c.h.b16 %v461
        %v704 = vunpack.c.l.b16 %v462
        %v705 = vunpack.c.h.b16 %v462
        %v706 = vunpack.c.l.b16 %v463
        %v707 = vunpack.c.h.b16 %v463
        %v708 = vunpack.c.l.b16 %v464
        %v709 = vunpack.c.h.b16 %v464
        %v710 = vunpack.c.l.b16 %v465
        %v711 = vunpack.c.h.b16 %v465
        %v712 = vunpack.c.l.b16 %v466
        %v713 = vunpack.c.h.b16 %v466
        %v714 = vunpack.c.l.b16 %v467
        %v715 = vunpack.c.h.b16 %v467
        %v716 = vunpack.c.l.b16 %v468
        %v717 = vunpack.c.h.b16 %v468
        %v718 = vunpack.c.l.b16 %v469
        %v719 = vunpack.c.h.b16 %v469
        %v720 = vunpack.c.l.b16 %v470
        %v721 = vunpack.c.h.b16 %v470
        %v722 = vunpack.c.l.b16 %v471
        %v723 = vunpack.c.h.b16 %v471
        %v724 = vunpack.c.l.b16 %v472
        %v725 = vunpack.c.h.b16 %v472
        %v726 = vunpack.c.l.b16 %v473
        %v727 = vunpack.c.h.b16 %v473
        %v728 = vunpack.c.l.b16 %v474
        %v729 = vunpack.c.h.b16 %v474
        %v730 = vunpack.c.l.b16 %v475
        %v731 = vunpack.c.h.b16 %v475
        %v732 = vpack.c.b16 %v608, %v604
        %v733 = vpack.c.b16 %v609, %v605
        %v734 = vpack.c.b16 %v610, %v606
        %v735 = vpack.c.b16 %v611, %v607
        %v736 = vpack.c.b16 %v616, %v612
        %v737 = vpack.c.b16 %v617, %v613
        %v738 = vpack.c.b16 %v618, %v614
        %v739 = vpack.c.b16 %v619, %v615
        %v740 = vpack.c.b16 %v624, %v620
        %v741 = vpack.c.b16 %v625, %v621
        %v742 = vpack.c.b16 %v626, %v622
        %v743 = vpack.c.b16 %v627, %v623
        %v744 = vpack.c.b16 %v632, %v628
        %v745 = vpack.c.b16 %v633, %v629
        %v746 = vpack.c.b16 %v634, %v630
        %v747 = vpack.c.b16 %v635, %v631
        %v748 = vpack.c.b16 %v640, %v636
        %v749 = vpack.c.b16 %v641, %v637
        %v750 = vpack.c.b16 %v642, %v638
        %v751 = vpack.c.b16 %v643, %v639
        %v752 = vpack.c.b16 %v648, %v644
        %v753 = vpack.c.b16 %v649, %v645
        %v754 = vpack.c.b16 %v650, %v646
        %v755 = vpack.c.b16 %v651, %v647
        %v756 = vpack.c.b16 %v656, %v652
        %v757 = vpack.c.b16 %v657, %v653
        %v758 = vpack.c.b16 %v658, %v654
        %v759 = vpack.c.b16 %v659, %v655
        %v760 = vpack.c.b16 %v664, %v660
        %v761 = vpack.c.b16 %v665, %v661
        %v762 = vpack.c.b16 %v666, %v662
        %v763 = vpack.c.b16 %v667, %v663
        %v764 = vpack.c.b16 %v672, %v668
        %v765 = vpack.c.b16 %v673, %v669
        %v766 = vpack.c.b16 %v674, %v670
        %v767 = vpack.c.b16 %v675, %v671
        %v768 = vpack.c.b16 %v680, %v676
        %v769 = vpack.c.b16 %v681, %v677
        %v770 = vpack.c.b16 %v682, %v678
        %v771 = vpack.c.b16 %v683, %v679
        %v772 = vpack.c.b16 %v688, %v684
        %v773 = vpack.c.b16 %v689, %v685
        %v774 = vpack.c.b16 %v690, %v686
        %v775 = vpack.c.b16 %v691, %v687
        %v776 = vpack.c.b16 %v696, %v692
        %v777 = vpack.c.b16 %v697, %v693
        %v778 = vpack.c.b16 %v698, %v694
        %v779 = vpack.c.b16 %v699, %v695
        %v780 = vpack.c.b16 %v704, %v700
        %v781 = vpack.c.b16 %v705, %v701
        %v782 = vpack.c.b16 %v706, %v702
        %v783 = vpack.c.b16 %v707, %v703
        %v784 = vpack.c.b16 %v712, %v708
        %v785 = vpack.c.b16 %v713, %v709
        %v786 = vpack.c.b16 %v714, %v710
        %v787 = vpack.c.b16 %v715, %v711
        %v788 = vpack.c.b16 %v720, %v716
        %v789 = vpack.c.b16 %v721, %v717
        %v790 = vpack.c.b16 %v722, %v718
        %v791 = vpack.c.b16 %v723, %v719
        %v792 = vpack.c.b16 %v728, %v724
        %v793 = vpack.c.b16 %v729, %v725
        %v794 = vpack.c.b16 %v730, %v726
        %v795 = vpack.c.b16 %v731, %v727
        %v924 = vunpack.c.l.b16 %v476
        %v925 = vunpack.c.h.b16 %v476
        %v926 = vunpack.c.l.b16 %v477
        %v927 = vunpack.c.h.b16 %v477
        %v928 = vunpack.c.l.b16 %v478
        %v929 = vunpack.c.h.b16 %v478
        %v930 = vunpack.c.l.b16 %v479
        %v931 = vunpack.c.h.b16 %v479
        %v932 = vunpack.c.l.b16 %v480
        %v933 = vunpack.c.h.b16 %v480
        %v934 = vunpack.c.l.b16 %v481
        %v935 = vunpack.c.h.b16 %v481
        %v936 = vunpack.c.l.b16 %v482
        %v937 = vunpack.c.h.b16 %v482
        %v938 = vunpack.c.l.b16 %v483
        %v939 = vunpack.c.h.b16 %v483
        %v940 = vunpack.c.l.b16 %v484
        %v941 = vunpack.c.h.b16 %v484
        %v942 = vunpack.c.l.b16 %v485
        %v943 = vunpack.c.h.b16 %v485
        %v944 = vunpack.c.l.b16 %v486
        %v945 = vunpack.c.h.b16 %v486
        %v946 = vunpack.c.l.b16 %v487
        %v947 = vunpack.c.h.b16 %v487
        %v948 = vunpack.c.l.b16 %v488
        %v949 = vunpack.c.h.b16 %v488
        %v950 = vunpack.c.l.b16 %v489
        %v951 = vunpack.c.h.b16 %v489
        %v952 = vunpack.c.l.b16 %v490
        %v953 = vunpack.c.h.b16 %v490
        %v954 = vunpack.c.l.b16 %v491
        %v955 = vunpack.c.h.b16 %v491
        %v956 = vunpack.c.l.b16 %v492
        %v957 = vunpack.c.h.b16 %v492
        %v958 = vunpack.c.l.b16 %v493
        %v959 = vunpack.c.h.b16 %v493
        %v960 = vunpack.c.l.b16 %v494
        %v961 = vunpack.c.h.b16 %v494
        %v962 = vunpack.c.l.b16 %v495
        %v963 = vunpack.c.h.b16 %v495
        %v964 = vunpack.c.l.b16 %v496
        %v965 = vunpack.c.h.b16 %v496
        %v966 = vunpack.c.l.b16 %v497
        %v967 = vunpack.c.h.b16 %v497
        %v968 = vunpack.c.l.b16 %v498
        %v969 = vunpack.c.h.b16 %v498
        %v970 = vunpack.c.l.b16 %v499
        %v971 = vunpack.c.h.b16 %v499
        %v972 = vunpack.c.l.b16 %v500
        %v973 = vunpack.c.h.b16 %v500
        %v974 = vunpack.c.l.b16 %v501
        %v975 = vunpack.c.h.b16 %v501
        %v976 = vunpack.c.l.b16 %v502
        %v977 = vunpack.c.h.b16 %v502
        %v978 = vunpack.c.l.b16 %v503
        %v979 = vunpack.c.h.b16 %v503
        %v980 = vunpack.c.l.b16 %v504
        %v981 = vunpack.c.h.b16 %v504
        %v982 = vunpack.c.l.b16 %v505
        %v983 = vunpack.c.h.b16 %v505
        %v984 = vunpack.c.l.b16 %v506
        %v985 = vunpack.c.h.b16 %v506
        %v986 = vunpack.c.l.b16 %v507
        %v987 = vunpack.c.h.b16 %v507
        %v988 = vunpack.c.l.b16 %v508
        %v989 = vunpack.c.h.b16 %v508
        %v990 = vunpack.c.l.b16 %v509
        %v991 = vunpack.c.h.b16 %v509
        %v992 = vunpack.c.l.b16 %v510
        %v993 = vunpack.c.h.b16 %v510
        %v994 = vunpack.c.l.b16 %v511
        %v995 = vunpack.c.h.b16 %v511
        %v996 = vunpack.c.l.b16 %v512
        %v997 = vunpack.c.h.b16 %v512
        %v998 = vunpack.c.l.b16 %v513
        %v999 = vunpack.c.h.b16 %v513
        %v1000 = vunpack.c.l.b16 %v514
        %v1001 = vunpack.c.h.b16 %v514
        %v1002 = vunpack.c.l.b16 %v515
        %v1003 = vunpack.c.h.b16 %v515
        %v1004 = vunpack.c.l.b16 %v516
        %v1005 = vunpack.c.h.b16 %v516
        %v1006 = vunpack.c.l.b16 %v517
        %v1007 = vunpack.c.h.b16 %v517
        %v1008 = vunpack.c.l.b16 %v518
        %v1009 = vunpack.c.h.b16 %v518
        %v1010 = vunpack.c.l.b16 %v519
        %v1011 = vunpack.c.h.b16 %v519
        %v1012 = vunpack.c.l.b16 %v520
        %v1013 = vunpack.c.h.b16 %v520
        %v1014 = vunpack.c.l.b16 %v521
        %v1015 = vunpack.c.h.b16 %v521
        %v1016 = vunpack.c.l.b16 %v522
        %v1017 = vunpack.c.h.b16 %v522
        %v1018 = vunpack.c.l.b16 %v523
        %v1019 = vunpack.c.h.b16 %v523
        %v1020 = vunpack.c.l.b16 %v524
        %v1021 = vunpack.c.h.b16 %v524
        %v1022 = vunpack.c.l.b16 %v525
        %v1023 = vunpack.c.h.b16 %v525
        %v1024 = vunpack.c.l.b16 %v526
        %v1025 = vunpack.c.h.b16 %v526
        %v1026 = vunpack.c.l.b16 %v527
        %v1027 = vunpack.c.h.b16 %v527
        %v1028 = vunpack.c.l.b16 %v528
        %v1029 = vunpack.c.h.b16 %v528
        %v1030 = vunpack.c.l.b16 %v529
        %v1031 = vunpack.c.h.b16 %v529
        %v1032 = vunpack.c.l.b16 %v530
        %v1033 = vunpack.c.h.b16 %v530
        %v1034 = vunpack.c.l.b16 %v531
        %v1035 = vunpack.c.h.b16 %v531
        %v1036 = vunpack.c.l.b16 %v532
        %v1037 = vunpack.c.h.b16 %v532
        %v1038 = vunpack.c.l.b16 %v533
        %v1039 = vunpack.c.h.b16 %v533
        %v1040 = vunpack.c.l.b16 %v534
        %v1041 = vunpack.c.h.b16 %v534
        %v1042 = vunpack.c.l.b16 %v535
        %v1043 = vunpack.c.h.b16 %v535
        %v1044 = vunpack.c.l.b16 %v536
        %v1045 = vunpack.c.h.b16 %v536
        %v1046 = vunpack.c.l.b16 %v537
        %v1047 = vunpack.c.h.b16 %v537
        %v1048 = vunpack.c.l.b16 %v538
        %v1049 = vunpack.c.h.b16 %v538
        %v1050 = vunpack.c.l.b16 %v539
        %v1051 = vunpack.c.h.b16 %v539
        %v1052 = vpack.c.b16 %v926, %v924
        %v1053 = vpack.c.b16 %v927, %v925
        %v1054 = vpack.c.b16 %v930, %v928
        %v1055 = vpack.c.b16 %v931, %v929
        %v1056 = vpack.c.b16 %v934, %v932
        %v1057 = vpack.c.b16 %v935, %v933
        %v1058 = vpack.c.b16 %v938, %v936
        %v1059 = vpack.c.b16 %v939, %v937
        %v1060 = vpack.c.b16 %v942, %v940
        %v1061 = vpack.c.b16 %v943, %v941
        %v1062 = vpack.c.b16 %v946, %v944
        %v1063 = vpack.c.b16 %v947, %v945
        %v1064 = vpack.c.b16 %v950, %v948
        %v1065 = vpack.c.b16 %v951, %v949
        %v1066 = vpack.c.b16 %v954, %v952
        %v1067 = vpack.c.b16 %v955, %v953
        %v1068 = vpack.c.b16 %v958, %v956
        %v1069 = vpack.c.b16 %v959, %v957
        %v1070 = vpack.c.b16 %v962, %v960
        %v1071 = vpack.c.b16 %v963, %v961
        %v1072 = vpack.c.b16 %v966, %v964
        %v1073 = vpack.c.b16 %v967, %v965
        %v1074 = vpack.c.b16 %v970, %v968
        %v1075 = vpack.c.b16 %v971, %v969
        %v1076 = vpack.c.b16 %v974, %v972
        %v1077 = vpack.c.b16 %v975, %v973
        %v1078 = vpack.c.b16 %v978, %v976
        %v1079 = vpack.c.b16 %v979, %v977
        %v1080 = vpack.c.b16 %v982, %v980
        %v1081 = vpack.c.b16 %v983, %v981
        %v1082 = vpack.c.b16 %v986, %v984
        %v1083 = vpack.c.b16 %v987, %v985
        %v1084 = vpack.c.b16 %v990, %v988
        %v1085 = vpack.c.b16 %v991, %v989
        %v1086 = vpack.c.b16 %v994, %v992
        %v1087 = vpack.c.b16 %v995, %v993
        %v1088 = vpack.c.b16 %v998, %v996
        %v1089 = vpack.c.b16 %v999, %v997
        %v1090 = vpack.c.b16 %v1002, %v1000
        %v1091 = vpack.c.b16 %v1003, %v1001
        %v1092 = vpack.c.b16 %v1006, %v1004
        %v1093 = vpack.c.b16 %v1007, %v1005
        %v1094 = vpack.c.b16 %v1010, %v1008
        %v1095 = vpack.c.b16 %v1011, %v1009
        %v1096 = vpack.c.b16 %v1014, %v1012
        %v1097 = vpack.c.b16 %v1015, %v1013
        %v1098 = vpack.c.b16 %v1018, %v1016
        %v1099 = vpack.c.b16 %v1019, %v1017
        %v1100 = vpack.c.b16 %v1022, %v1020
        %v1101 = vpack.c.b16 %v1023, %v1021
        %v1102 = vpack.c.b16 %v1026, %v1024
        %v1103 = vpack.c.b16 %v1027, %v1025
        %v1104 = vpack.c.b16 %v1030, %v1028
        %v1105 = vpack.c.b16 %v1031, %v1029
        %v1106 = vpack.c.b16 %v1034, %v1032
        %v1107 = vpack.c.b16 %v1035, %v1033
        %v1108 = vpack.c.b16 %v1038, %v1036
        %v1109 = vpack.c.b16 %v1039, %v1037
        %v1110 = vpack.c.b16 %v1042, %v1040
        %v1111 = vpack.c.b16 %v1043, %v1041
        %v1112 = vpack.c.b16 %v1046, %v1044
        %v1113 = vpack.c.b16 %v1047, %v1045
        %v1114 = vpack.c.b16 %v1050, %v1048
        %v1115 = vpack.c.b16 %v1051, %v1049
        %1180 = vmatprep.subr.bf16.mxu0 %v1053
        %1181 = vmatpush1.bf16.msra.mxu0 %v1052
        %1182 = vmatprep.subr.bf16.mxu0 %v1055
        %1183 = vmatpush1.bf16.msra.mxu0 %v1054
        %1184 = vmatprep.subr.bf16.mxu0 %v1057
        %1185 = vmatpush1.bf16.msra.mxu0 %v1056
        %1186 = vmatprep.subr.bf16.mxu0 %v1059
        %1187 = vmatpush1.bf16.msra.mxu0 %v1058
        %1188 = vmatprep.subr.bf16.mxu0 %v1061
        %1189 = vmatpush1.bf16.msra.mxu0 %v1060
        %1190 = vmatprep.subr.bf16.mxu0 %v1063
        %1191 = vmatpush1.bf16.msra.mxu0 %v1062
        %1192 = vmatprep.subr.bf16.mxu0 %v1065
        %1193 = vmatpush1.bf16.msra.mxu0 %v1064
        %1194 = vmatprep.subr.bf16.mxu0 %v1067
        %1195 = vmatpush1.bf16.msra.mxu0 %v1066
        %1196 = vmatprep.subr.bf16.mxu0 %v1069
        %1197 = vmatpush1.bf16.msra.mxu0 %v1068
        %1198 = vmatprep.subr.bf16.mxu0 %v1071
        %1199 = vmatpush1.bf16.msra.mxu0 %v1070
        %1200 = vmatprep.subr.bf16.mxu0 %v1073
        %1201 = vmatpush1.bf16.msra.mxu0 %v1072
        %1202 = vmatprep.subr.bf16.mxu0 %v1075
        %1203 = vmatpush1.bf16.msra.mxu0 %v1074
        %1204 = vmatprep.subr.bf16.mxu0 %v1077
        %1205 = vmatpush1.bf16.msra.mxu0 %v1076
        %1206 = vmatprep.subr.bf16.mxu0 %v1079
        %1207 = vmatpush1.bf16.msra.mxu0 %v1078
        %1208 = vmatprep.subr.bf16.mxu0 %v1081
        %1209 = vmatpush1.bf16.msra.mxu0 %v1080
        %1210 = vmatprep.subr.bf16.mxu0 %v1083
        %1211 = vmatpush1.bf16.msra.mxu0 %v1082
        %1212 = vmatprep.mubr.bf16.mxu0 %v733
        %1213 = vmatmul.mubr.bf16.gmra.mrb[0].mxu0 %v732
        %v1214 = vpop.f32.mrb[0].mxu0
        %v1215 = vadd.f32 0.0, %v1214
        %v1216 = vpop.f32.mrb[0].mxu0
        %v1217 = vadd.f32 0.0, %v1216
        %v1218 = vpop.f32.mrb[0].mxu0
        %v1219 = vadd.f32 0.0, %v1218
        %v1220 = vpop.f32.mrb[0].mxu0
        %v1221 = vadd.f32 0.0, %v1220
        %1222 = vmatprep.mubr.bf16.mxu0 %v737
        %1223 = vmatmul.mubr.bf16.gmra.mrb[0].mxu0 %v736
        %v1224 = vpop.f32.mrb[0].mxu0
        %v1225 = vadd.f32 0.0, %v1224
        %v1226 = vpop.f32.mrb[0].mxu0
        %v1227 = vadd.f32 0.0, %v1226
        %v1228 = vpop.f32.mrb[0].mxu0
        %v1229 = vadd.f32 0.0, %v1228
        %v1230 = vpop.f32.mrb[0].mxu0
        %v1231 = vadd.f32 0.0, %v1230
        %1232 = vmatprep.mubr.bf16.mxu0 %v741
        %1233 = vmatmul.mubr.bf16.gmra.mrb[0].mxu0 %v740
        %v1234 = vpop.f32.mrb[0].mxu0
        %v1235 = vadd.f32 0.0, %v1234
        %v1236 = vpop.f32.mrb[0].mxu0
        %v1237 = vadd.f32 0.0, %v1236
        %v1238 = vpop.f32.mrb[0].mxu0
        %v1239 = vadd.f32 0.0, %v1238
        %v1240 = vpop.f32.mrb[0].mxu0
        %v1241 = vadd.f32 0.0, %v1240
        %1242 = vmatprep.mubr.bf16.mxu0 %v745
        %1243 = vmatmul.mubr.bf16.gmra.mrb[0].mxu0 %v744
        %v1244 = vpop.f32.mrb[0].mxu0
        %v1245 = vadd.f32 0.0, %v1244
        %v1246 = vpop.f32.mrb[0].mxu0
        %v1247 = vadd.f32 0.0, %v1246
        %v1248 = vpop.f32.mrb[0].mxu0
        %v1249 = vadd.f32 0.0, %v1248
        %v1250 = vpop.f32.mrb[0].mxu0
        %v1251 = vadd.f32 0.0, %v1250
        %1252 = vmatprep.mubr.bf16.mxu0 %v749
        %1253 = vmatmul.mubr.bf16.gmra.mrb[0].mxu0 %v748
        %v1254 = vpop.f32.mrb[0].mxu0
        %v1255 = vadd.f32 0.0, %v1254
        %v1256 = vpop.f32.mrb[0].mxu0
        %v1257 = vadd.f32 0.0, %v1256
        %v1258 = vpop.f32.mrb[0].mxu0
        %v1259 = vadd.f32 0.0, %v1258
        %v1260 = vpop.f32.mrb[0].mxu0
        %v1261 = vadd.f32 0.0, %v1260
        %1262 = vmatprep.mubr.bf16.mxu0 %v753
        %1263 = vmatmul.mubr.bf16.gmra.mrb[0].mxu0 %v752
        %v1264 = vpop.f32.mrb[0].mxu0
        %v1265 = vadd.f32 0.0, %v1264
        %v1266 = vpop.f32.mrb[0].mxu0
        %v1267 = vadd.f32 0.0, %v1266
        %v1268 = vpop.f32.mrb[0].mxu0
        %v1269 = vadd.f32 0.0, %v1268
        %v1270 = vpop.f32.mrb[0].mxu0
        %v1271 = vadd.f32 0.0, %v1270
        %1272 = vmatprep.mubr.bf16.mxu0 %v757
        %1273 = vmatmul.mubr.bf16.gmra.mrb[0].mxu0 %v756
        %v1274 = vpop.f32.mrb[0].mxu0
        %v1275 = vadd.f32 0.0, %v1274
        %v1276 = vpop.f32.mrb[0].mxu0
        %v1277 = vadd.f32 0.0, %v1276
        %v1278 = vpop.f32.mrb[0].mxu0
        %v1279 = vadd.f32 0.0, %v1278
        %v1280 = vpop.f32.mrb[0].mxu0
        %v1281 = vadd.f32 0.0, %v1280
        %1282 = vmatprep.mubr.bf16.mxu0 %v761
        %1283 = vmatmul.mubr.bf16.gmra.mrb[0].mxu0 %v760
        %v1284 = vpop.f32.mrb[0].mxu0
        %v1285 = vadd.f32 0.0, %v1284
        %v1286 = vpop.f32.mrb[0].mxu0
        %v1287 = vadd.f32 0.0, %v1286
        %v1288 = vpop.f32.mrb[0].mxu0
        %v1289 = vadd.f32 0.0, %v1288
        %v1290 = vpop.f32.mrb[0].mxu0
        %v1291 = vadd.f32 0.0, %v1290
        %1292 = vmatprep.mubr.bf16.mxu0 %v765
        %1293 = vmatmul.mubr.bf16.gmra.mrb[0].mxu0 %v764
        %v1294 = vpop.f32.mrb[0].mxu0
        %v1295 = vadd.f32 0.0, %v1294
        %v1296 = vpop.f32.mrb[0].mxu0
        %v1297 = vadd.f32 0.0, %v1296
        %v1298 = vpop.f32.mrb[0].mxu0
        %v1299 = vadd.f32 0.0, %v1298
        %v1300 = vpop.f32.mrb[0].mxu0
        %v1301 = vadd.f32 0.0, %v1300
        %1302 = vmatprep.mubr.bf16.mxu0 %v769
        %1303 = vmatmul.mubr.bf16.gmra.mrb[0].mxu0 %v768
        %v1304 = vpop.f32.mrb[0].mxu0
        %v1305 = vadd.f32 0.0, %v1304
        %v1306 = vpop.f32.mrb[0].mxu0
        %v1307 = vadd.f32 0.0, %v1306
        %v1308 = vpop.f32.mrb[0].mxu0
        %v1309 = vadd.f32 0.0, %v1308
        %v1310 = vpop.f32.mrb[0].mxu0
        %v1311 = vadd.f32 0.0, %v1310
        %1312 = vmatprep.mubr.bf16.mxu0 %v773
        %1313 = vmatmul.mubr.bf16.gmra.mrb[0].mxu0 %v772
        %v1314 = vpop.f32.mrb[0].mxu0
        %v1315 = vadd.f32 0.0, %v1314
        %v1316 = vpop.f32.mrb[0].mxu0
        %v1317 = vadd.f32 0.0, %v1316
        %v1318 = vpop.f32.mrb[0].mxu0
        %v1319 = vadd.f32 0.0, %v1318
        %v1320 = vpop.f32.mrb[0].mxu0
        %v1321 = vadd.f32 0.0, %v1320
        %1322 = vmatprep.mubr.bf16.mxu0 %v777
        %1323 = vmatmul.mubr.bf16.gmra.mrb[0].mxu0 %v776
        %v1324 = vpop.f32.mrb[0].mxu0
        %v1325 = vadd.f32 0.0, %v1324
        %v1326 = vpop.f32.mrb[0].mxu0
        %v1327 = vadd.f32 0.0, %v1326
        %v1328 = vpop.f32.mrb[0].mxu0
        %v1329 = vadd.f32 0.0, %v1328
        %v1330 = vpop.f32.mrb[0].mxu0
        %v1331 = vadd.f32 0.0, %v1330
        %1332 = vmatprep.mubr.bf16.mxu0 %v781
        %1333 = vmatmul.mubr.bf16.gmra.mrb[0].mxu0 %v780
        %v1334 = vpop.f32.mrb[0].mxu0
        %v1335 = vadd.f32 0.0, %v1334
        %v1336 = vpop.f32.mrb[0].mxu0
        %v1337 = vadd.f32 0.0, %v1336
        %v1338 = vpop.f32.mrb[0].mxu0
        %v1339 = vadd.f32 0.0, %v1338
        %v1340 = vpop.f32.mrb[0].mxu0
        %v1341 = vadd.f32 0.0, %v1340
        %1342 = vmatprep.mubr.bf16.mxu0 %v785
        %1343 = vmatmul.mubr.bf16.gmra.mrb[0].mxu0 %v784
        %v1344 = vpop.f32.mrb[0].mxu0
        %v1345 = vadd.f32 0.0, %v1344
        %v1346 = vpop.f32.mrb[0].mxu0
        %v1347 = vadd.f32 0.0, %v1346
        %v1348 = vpop.f32.mrb[0].mxu0
        %v1349 = vadd.f32 0.0, %v1348
        %v1350 = vpop.f32.mrb[0].mxu0
        %v1351 = vadd.f32 0.0, %v1350
        %1352 = vmatprep.mubr.bf16.mxu0 %v789
        %1353 = vmatmul.mubr.bf16.gmra.mrb[0].mxu0 %v788
        %v1354 = vpop.f32.mrb[0].mxu0
        %v1355 = vadd.f32 0.0, %v1354
        %v1356 = vpop.f32.mrb[0].mxu0
        %v1357 = vadd.f32 0.0, %v1356
        %v1358 = vpop.f32.mrb[0].mxu0
        %v1359 = vadd.f32 0.0, %v1358
        %v1360 = vpop.f32.mrb[0].mxu0
        %v1361 = vadd.f32 0.0, %v1360
        %1362 = vmatprep.mubr.bf16.mxu0 %v793
        %1363 = vmatmul.mubr.bf16.gmra.mrb[0].mxu0 %v792
        %v1364 = vpop.f32.mrb[0].mxu0
        %v1365 = vadd.f32 0.0, %v1364
        %v1366 = vpop.f32.mrb[0].mxu0
        %v1367 = vadd.f32 0.0, %v1366
        %v1368 = vpop.f32.mrb[0].mxu0
        %v1369 = vadd.f32 0.0, %v1368
        %v1370 = vpop.f32.mrb[0].mxu0
        %v1371 = vadd.f32 0.0, %v1370
        %1372 = vdwg.mxu0
        %1373 = vmatprep.subr.bf16.mxu0 %v1085
        %1374 = vmatpush1.bf16.msra.mxu0 %v1084
        %1375 = vmatprep.subr.bf16.mxu0 %v1087
        %1376 = vmatpush1.bf16.msra.mxu0 %v1086
        %1377 = vmatprep.subr.bf16.mxu0 %v1089
        %1378 = vmatpush1.bf16.msra.mxu0 %v1088
        %1379 = vmatprep.subr.bf16.mxu0 %v1091
        %1380 = vmatpush1.bf16.msra.mxu0 %v1090
        %1381 = vmatprep.subr.bf16.mxu0 %v1093
        %1382 = vmatpush1.bf16.msra.mxu0 %v1092
        %1383 = vmatprep.subr.bf16.mxu0 %v1095
        %1384 = vmatpush1.bf16.msra.mxu0 %v1094
        %1385 = vmatprep.subr.bf16.mxu0 %v1097
        %1386 = vmatpush1.bf16.msra.mxu0 %v1096
        %1387 = vmatprep.subr.bf16.mxu0 %v1099
        %1388 = vmatpush1.bf16.msra.mxu0 %v1098
        %1389 = vmatprep.subr.bf16.mxu0 %v1101
        %1390 = vmatpush1.bf16.msra.mxu0 %v1100
        %1391 = vmatprep.subr.bf16.mxu0 %v1103
        %1392 = vmatpush1.bf16.msra.mxu0 %v1102
        %1393 = vmatprep.subr.bf16.mxu0 %v1105
        %1394 = vmatpush1.bf16.msra.mxu0 %v1104
        %1395 = vmatprep.subr.bf16.mxu0 %v1107
        %1396 = vmatpush1.bf16.msra.mxu0 %v1106
        %1397 = vmatprep.subr.bf16.mxu0 %v1109
        %1398 = vmatpush1.bf16.msra.mxu0 %v1108
        %1399 = vmatprep.subr.bf16.mxu0 %v1111
        %1400 = vmatpush1.bf16.msra.mxu0 %v1110
        %1401 = vmatprep.subr.bf16.mxu0 %v1113
        %1402 = vmatpush1.bf16.msra.mxu0 %v1112
        %1403 = vmatprep.subr.bf16.mxu0 %v1115
        %1404 = vmatpush1.bf16.msra.mxu0 %v1114
        %1405 = vmatprep.mubr.bf16.mxu0 %v735
        %1406 = vmatmul.mubr.bf16.gmra.mrb[0].mxu0 %v734
        %v1407 = vpop.f32.mrb[0].mxu0
        %v1408 = vadd.f32 %v1215, %v1407
        %v1409 = vpop.f32.mrb[0].mxu0
        %v1410 = vadd.f32 %v1217, %v1409
        %v1411 = vpop.f32.mrb[0].mxu0
        %v1412 = vadd.f32 %v1219, %v1411
        %v1413 = vpop.f32.mrb[0].mxu0
        %v1414 = vadd.f32 %v1221, %v1413
        %1415 = vmatprep.mubr.bf16.mxu0 %v739
        %1416 = vmatmul.mubr.bf16.gmra.mrb[0].mxu0 %v738
        %v1417 = vpop.f32.mrb[0].mxu0
        %v1418 = vadd.f32 %v1225, %v1417
        %v1419 = vpop.f32.mrb[0].mxu0
        %v1420 = vadd.f32 %v1227, %v1419
        %v1421 = vpop.f32.mrb[0].mxu0
        %v1422 = vadd.f32 %v1229, %v1421
        %v1423 = vpop.f32.mrb[0].mxu0
        %v1424 = vadd.f32 %v1231, %v1423
        %1425 = vmatprep.mubr.bf16.mxu0 %v743
        %1426 = vmatmul.mubr.bf16.gmra.mrb[0].mxu0 %v742
        %v1427 = vpop.f32.mrb[0].mxu0
        %v1428 = vadd.f32 %v1235, %v1427
        %v1429 = vpop.f32.mrb[0].mxu0
        %v1430 = vadd.f32 %v1237, %v1429
        %v1431 = vpop.f32.mrb[0].mxu0
        %v1432 = vadd.f32 %v1239, %v1431
        %v1433 = vpop.f32.mrb[0].mxu0
        %v1434 = vadd.f32 %v1241, %v1433
        %1435 = vmatprep.mubr.bf16.mxu0 %v747
        %1436 = vmatmul.mubr.bf16.gmra.mrb[0].mxu0 %v746
        %v1437 = vpop.f32.mrb[0].mxu0
        %v1438 = vadd.f32 %v1245, %v1437
        %v1439 = vpop.f32.mrb[0].mxu0
        %v1440 = vadd.f32 %v1247, %v1439
        %v1441 = vpop.f32.mrb[0].mxu0
        %v1442 = vadd.f32 %v1249, %v1441
        %v1443 = vpop.f32.mrb[0].mxu0
        %v1444 = vadd.f32 %v1251, %v1443
        %1445 = vmatprep.mubr.bf16.mxu0 %v751
        %1446 = vmatmul.mubr.bf16.gmra.mrb[0].mxu0 %v750
        %v1447 = vpop.f32.mrb[0].mxu0
        %v1448 = vadd.f32 %v1255, %v1447
        %v1449 = vpop.f32.mrb[0].mxu0
        %v1450 = vadd.f32 %v1257, %v1449
        %v1451 = vpop.f32.mrb[0].mxu0
        %v1452 = vadd.f32 %v1259, %v1451
        %v1453 = vpop.f32.mrb[0].mxu0
        %v1454 = vadd.f32 %v1261, %v1453
        %1455 = vmatprep.mubr.bf16.mxu0 %v755
        %1456 = vmatmul.mubr.bf16.gmra.mrb[0].mxu0 %v754
        %v1457 = vpop.f32.mrb[0].mxu0
        %v1458 = vadd.f32 %v1265, %v1457
        %v1459 = vpop.f32.mrb[0].mxu0
        %v1460 = vadd.f32 %v1267, %v1459
        %v1461 = vpop.f32.mrb[0].mxu0
        %v1462 = vadd.f32 %v1269, %v1461
        %v1463 = vpop.f32.mrb[0].mxu0
        %v1464 = vadd.f32 %v1271, %v1463
        %1465 = vmatprep.mubr.bf16.mxu0 %v759
        %1466 = vmatmul.mubr.bf16.gmra.mrb[0].mxu0 %v758
        %v1467 = vpop.f32.mrb[0].mxu0
        %v1468 = vadd.f32 %v1275, %v1467
        %v1469 = vpop.f32.mrb[0].mxu0
        %v1470 = vadd.f32 %v1277, %v1469
        %v1471 = vpop.f32.mrb[0].mxu0
        %v1472 = vadd.f32 %v1279, %v1471
        %v1473 = vpop.f32.mrb[0].mxu0
        %v1474 = vadd.f32 %v1281, %v1473
        %1475 = vmatprep.mubr.bf16.mxu0 %v763
        %1476 = vmatmul.mubr.bf16.gmra.mrb[0].mxu0 %v762
        %v1477 = vpop.f32.mrb[0].mxu0
        %v1478 = vadd.f32 %v1285, %v1477
        %v1479 = vpop.f32.mrb[0].mxu0
        %v1480 = vadd.f32 %v1287, %v1479
        %v1481 = vpop.f32.mrb[0].mxu0
        %v1482 = vadd.f32 %v1289, %v1481
        %v1483 = vpop.f32.mrb[0].mxu0
        %v1484 = vadd.f32 %v1291, %v1483
        %1485 = vmatprep.mubr.bf16.mxu0 %v767
        %1486 = vmatmul.mubr.bf16.gmra.mrb[0].mxu0 %v766
        %v1487 = vpop.f32.mrb[0].mxu0
        %v1488 = vadd.f32 %v1295, %v1487
        %v1489 = vpop.f32.mrb[0].mxu0
        %v1490 = vadd.f32 %v1297, %v1489
        %v1491 = vpop.f32.mrb[0].mxu0
        %v1492 = vadd.f32 %v1299, %v1491
        %v1493 = vpop.f32.mrb[0].mxu0
        %v1494 = vadd.f32 %v1301, %v1493
        %1495 = vmatprep.mubr.bf16.mxu0 %v771
        %1496 = vmatmul.mubr.bf16.gmra.mrb[0].mxu0 %v770
        %v1497 = vpop.f32.mrb[0].mxu0
        %v1498 = vadd.f32 %v1305, %v1497
        %v1499 = vpop.f32.mrb[0].mxu0
        %v1500 = vadd.f32 %v1307, %v1499
        %v1501 = vpop.f32.mrb[0].mxu0
        %v1502 = vadd.f32 %v1309, %v1501
        %v1503 = vpop.f32.mrb[0].mxu0
        %v1504 = vadd.f32 %v1311, %v1503
        %1505 = vmatprep.mubr.bf16.mxu0 %v775
        %1506 = vmatmul.mubr.bf16.gmra.mrb[0].mxu0 %v774
        %v1507 = vpop.f32.mrb[0].mxu0
        %v1508 = vadd.f32 %v1315, %v1507
        %v1509 = vpop.f32.mrb[0].mxu0
        %v1510 = vadd.f32 %v1317, %v1509
        %v1511 = vpop.f32.mrb[0].mxu0
        %v1512 = vadd.f32 %v1319, %v1511
        %v1513 = vpop.f32.mrb[0].mxu0
        %v1514 = vadd.f32 %v1321, %v1513
        %1515 = vmatprep.mubr.bf16.mxu0 %v779
        %1516 = vmatmul.mubr.bf16.gmra.mrb[0].mxu0 %v778
        %v1517 = vpop.f32.mrb[0].mxu0
        %v1518 = vadd.f32 %v1325, %v1517
        %v1519 = vpop.f32.mrb[0].mxu0
        %v1520 = vadd.f32 %v1327, %v1519
        %v1521 = vpop.f32.mrb[0].mxu0
        %v1522 = vadd.f32 %v1329, %v1521
        %v1523 = vpop.f32.mrb[0].mxu0
        %v1524 = vadd.f32 %v1331, %v1523
        %1525 = vmatprep.mubr.bf16.mxu0 %v783
        %1526 = vmatmul.mubr.bf16.gmra.mrb[0].mxu0 %v782
        %v1527 = vpop.f32.mrb[0].mxu0
        %v1528 = vadd.f32 %v1335, %v1527
        %v1529 = vpop.f32.mrb[0].mxu0
        %v1530 = vadd.f32 %v1337, %v1529
        %v1531 = vpop.f32.mrb[0].mxu0
        %v1532 = vadd.f32 %v1339, %v1531
        %v1533 = vpop.f32.mrb[0].mxu0
        %v1534 = vadd.f32 %v1341, %v1533
        %1535 = vmatprep.mubr.bf16.mxu0 %v787
        %1536 = vmatmul.mubr.bf16.gmra.mrb[0].mxu0 %v786
        %v1537 = vpop.f32.mrb[0].mxu0
        %v1538 = vadd.f32 %v1345, %v1537
        %v1539 = vpop.f32.mrb[0].mxu0
        %v1540 = vadd.f32 %v1347, %v1539
        %v1541 = vpop.f32.mrb[0].mxu0
        %v1542 = vadd.f32 %v1349, %v1541
        %v1543 = vpop.f32.mrb[0].mxu0
        %v1544 = vadd.f32 %v1351, %v1543
        %1545 = vmatprep.mubr.bf16.mxu0 %v791
        %1546 = vmatmul.mubr.bf16.gmra.mrb[0].mxu0 %v790
        %v1547 = vpop.f32.mrb[0].mxu0
        %v1548 = vadd.f32 %v1355, %v1547
        %v1549 = vpop.f32.mrb[0].mxu0
        %v1550 = vadd.f32 %v1357, %v1549
        %v1551 = vpop.f32.mrb[0].mxu0
        %v1552 = vadd.f32 %v1359, %v1551
        %v1553 = vpop.f32.mrb[0].mxu0
        %v1554 = vadd.f32 %v1361, %v1553
        %1555 = vmatprep.mubr.bf16.mxu0 %v795
        %1556 = vmatmul.mubr.bf16.gmra.mrb[0].mxu0 %v794
        %v1557 = vpop.f32.mrb[0].mxu0
        %v1558 = vadd.f32 %v1365, %v1557
        %v1559 = vpop.f32.mrb[0].mxu0
        %v1560 = vadd.f32 %v1367, %v1559
        %v1561 = vpop.f32.mrb[0].mxu0
        %v1562 = vadd.f32 %v1369, %v1561
        %v1563 = vpop.f32.mrb[0].mxu0
        %v1564 = vadd.f32 %v1371, %v1563
        %1565 = vdwg.mxu0
        %v1566 = vadd.f32 %v348, %v1408
        %v1567 = vadd.f32 %v349, %v1410
        %v1568 = vadd.f32 %v350, %v1412
        %v1569 = vadd.f32 %v351, %v1414
        %v1570 = vadd.f32 %v352, %v1418
        %v1571 = vadd.f32 %v353, %v1420
        %v1572 = vadd.f32 %v354, %v1422
        %v1573 = vadd.f32 %v355, %v1424
        %v1574 = vadd.f32 %v356, %v1428
        %v1575 = vadd.f32 %v357, %v1430
        %v1576 = vadd.f32 %v358, %v1432
        %v1577 = vadd.f32 %v359, %v1434
        %v1578 = vadd.f32 %v360, %v1438
        %v1579 = vadd.f32 %v361, %v1440
        %v1580 = vadd.f32 %v362, %v1442
        %v1581 = vadd.f32 %v363, %v1444
        %v1582 = vadd.f32 %v364, %v1448
        %v1583 = vadd.f32 %v365, %v1450
        %v1584 = vadd.f32 %v366, %v1452
        %v1585 = vadd.f32 %v367, %v1454
        %v1586 = vadd.f32 %v368, %v1458
        %v1587 = vadd.f32 %v369, %v1460
        %v1588 = vadd.f32 %v370, %v1462
        %v1589 = vadd.f32 %v371, %v1464
        %v1590 = vadd.f32 %v372, %v1468
        %v1591 = vadd.f32 %v373, %v1470
        %v1592 = vadd.f32 %v374, %v1472
        %v1593 = vadd.f32 %v375, %v1474
        %v1594 = vadd.f32 %v376, %v1478
        %v1595 = vadd.f32 %v377, %v1480
        %v1596 = vadd.f32 %v378, %v1482
        %v1597 = vadd.f32 %v379, %v1484
        %v1598 = vadd.f32 %v380, %v1488
        %v1599 = vadd.f32 %v381, %v1490
        %v1600 = vadd.f32 %v382, %v1492
        %v1601 = vadd.f32 %v383, %v1494
        %v1602 = vadd.f32 %v384, %v1498
        %v1603 = vadd.f32 %v385, %v1500
        %v1604 = vadd.f32 %v386, %v1502
        %v1605 = vadd.f32 %v387, %v1504
        %v1606 = vadd.f32 %v388, %v1508
        %v1607 = vadd.f32 %v389, %v1510
        %v1608 = vadd.f32 %v390, %v1512
        %v1609 = vadd.f32 %v391, %v1514
        %v1610 = vadd.f32 %v392, %v1518
        %v1611 = vadd.f32 %v393, %v1520
        %v1612 = vadd.f32 %v394, %v1522
        %v1613 = vadd.f32 %v395, %v1524
        %v1614 = vadd.f32 %v396, %v1528
        %v1615 = vadd.f32 %v397, %v1530
        %v1616 = vadd.f32 %v398, %v1532
        %v1617 = vadd.f32 %v399, %v1534
        %v1618 = vadd.f32 %v400, %v1538
        %v1619 = vadd.f32 %v401, %v1540
        %v1620 = vadd.f32 %v402, %v1542
        %v1621 = vadd.f32 %v403, %v1544
        %v1622 = vadd.f32 %v404, %v1548
        %v1623 = vadd.f32 %v405, %v1550
        %v1624 = vadd.f32 %v406, %v1552
        %v1625 = vadd.f32 %v407, %v1554
        %v1626 = vadd.f32 %v408, %v1558
        %v1627 = vadd.f32 %v409, %v1560
        %v1628 = vadd.f32 %v410, %v1562
        %v1629 = vadd.f32 %v411, %v1564
        %1630 = vst [vmem:[#allocation8] sm:$0xff] %v1566
        %1631 = vst [vmem:[#allocation8 + $0x8] sm:$0xff] %v1567
        %1632 = vst [vmem:[#allocation8 + $0x10] sm:$0xff] %v1568
        %1633 = vst [vmem:[#allocation8 + $0x18] sm:$0xff] %v1569
        %1634 = vst [vmem:[#allocation8 + $0x20] sm:$0xff] %v1570
        %1635 = vst [vmem:[#allocation8 + $0x28] sm:$0xff] %v1571
        %1636 = vst [vmem:[#allocation8 + $0x30] sm:$0xff] %v1572
        %1637 = vst [vmem:[#allocation8 + $0x38] sm:$0xff] %v1573
        %1638 = vst [vmem:[#allocation8 + $0x40] sm:$0xff] %v1574
        %1639 = vst [vmem:[#allocation8 + $0x48] sm:$0xff] %v1575
        %1640 = vst [vmem:[#allocation8 + $0x50] sm:$0xff] %v1576
        %1641 = vst [vmem:[#allocation8 + $0x58] sm:$0xff] %v1577
        %1642 = vst [vmem:[#allocation8 + $0x60] sm:$0xff] %v1578
        %1643 = vst [vmem:[#allocation8 + $0x68] sm:$0xff] %v1579
        %1644 = vst [vmem:[#allocation8 + $0x70] sm:$0xff] %v1580
        %1645 = vst [vmem:[#allocation8 + $0x78] sm:$0xff] %v1581
        %1646 = vst [vmem:[#allocation8 + $0x80] sm:$0xff] %v1582
        %1647 = vst [vmem:[#allocation8 + $0x88] sm:$0xff] %v1583
        %1648 = vst [vmem:[#allocation8 + $0x90] sm:$0xff] %v1584
        %1649 = vst [vmem:[#allocation8 + $0x98] sm:$0xff] %v1585
        %1650 = vst [vmem:[#allocation8 + $0xa0] sm:$0xff] %v1586
        %1651 = vst [vmem:[#allocation8 + $0xa8] sm:$0xff] %v1587
        %1652 = vst [vmem:[#allocation8 + $0xb0] sm:$0xff] %v1588
        %1653 = vst [vmem:[#allocation8 + $0xb8] sm:$0xff] %v1589
        %1654 = vst [vmem:[#allocation8 + $0xc0] sm:$0xff] %v1590
        %1655 = vst [vmem:[#allocation8 + $0xc8] sm:$0xff] %v1591
        %1656 = vst [vmem:[#allocation8 + $0xd0] sm:$0xff] %v1592
        %1657 = vst [vmem:[#allocation8 + $0xd8] sm:$0xff] %v1593
        %1658 = vst [vmem:[#allocation8 + $0xe0] sm:$0xff] %v1594
        %1659 = vst [vmem:[#allocation8 + $0xe8] sm:$0xff] %v1595
        %1660 = vst [vmem:[#allocation8 + $0xf0] sm:$0xff] %v1596
        %1661 = vst [vmem:[#allocation8 + $0xf8] sm:$0xff] %v1597
        %1662 = vst [vmem:[#allocation8 + $0x100] sm:$0xff] %v1598
        %1663 = vst [vmem:[#allocation8 + $0x108] sm:$0xff] %v1599
        %1664 = vst [vmem:[#allocation8 + $0x110] sm:$0xff] %v1600
        %1665 = vst [vmem:[#allocation8 + $0x118] sm:$0xff] %v1601
        %1666 = vst [vmem:[#allocation8 + $0x120] sm:$0xff] %v1602
        %1667 = vst [vmem:[#allocation8 + $0x128] sm:$0xff] %v1603
        %1668 = vst [vmem:[#allocation8 + $0x130] sm:$0xff] %v1604
        %1669 = vst [vmem:[#allocation8 + $0x138] sm:$0xff] %v1605
        %1670 = vst [vmem:[#allocation8 + $0x140] sm:$0xff] %v1606
        %1671 = vst [vmem:[#allocation8 + $0x148] sm:$0xff] %v1607
        %1672 = vst [vmem:[#allocation8 + $0x150] sm:$0xff] %v1608
        %1673 = vst [vmem:[#allocation8 + $0x158] sm:$0xff] %v1609
        %1674 = vst [vmem:[#allocation8 + $0x160] sm:$0xff] %v1610
        %1675 = vst [vmem:[#allocation8 + $0x168] sm:$0xff] %v1611
        %1676 = vst [vmem:[#allocation8 + $0x170] sm:$0xff] %v1612
        %1677 = vst [vmem:[#allocation8 + $0x178] sm:$0xff] %v1613
        %1678 = vst [vmem:[#allocation8 + $0x180] sm:$0xff] %v1614
        %1679 = vst [vmem:[#allocation8 + $0x188] sm:$0xff] %v1615
        %1680 = vst [vmem:[#allocation8 + $0x190] sm:$0xff] %v1616
        %1681 = vst [vmem:[#allocation8 + $0x198] sm:$0xff] %v1617
        %1682 = vst [vmem:[#allocation8 + $0x1a0] sm:$0xff] %v1618
        %1683 = vst [vmem:[#allocation8 + $0x1a8] sm:$0xff] %v1619
        %1684 = vst [vmem:[#allocation8 + $0x1b0] sm:$0xff] %v1620
        %1685 = vst [vmem:[#allocation8 + $0x1b8] sm:$0xff] %v1621
        %1686 = vst [vmem:[#allocation8 + $0x1c0] sm:$0xff] %v1622
        %1687 = vst [vmem:[#allocation8 + $0x1c8] sm:$0xff] %v1623
        %1688 = vst [vmem:[#allocation8 + $0x1d0] sm:$0xff] %v1624
        %1689 = vst [vmem:[#allocation8 + $0x1d8] sm:$0xff] %v1625
        %1690 = vst [vmem:[#allocation8 + $0x1e0] sm:$0xff] %v1626
        %1691 = vst [vmem:[#allocation8 + $0x1e8] sm:$0xff] %v1627
        %1692 = vst [vmem:[#allocation8 + $0x1f0] sm:$0xff] %v1628
        %1693 = vst [vmem:[#allocation8 + $0x1f8] sm:$0xff] %v1629
        %p1694 = scmp.eq.s32.totalorder %s28, 8
        // Predicated region
        $region49: #{tpu_custom_call.1} parent=31 // pred_check
          %p1695 = pneg %p1694
        $region50: #{tpu_custom_call.1} parent=31 // pred_check_branch
          %1697 = sbr.rel (%p1695) target = $region52
        $region51: #{tpu_custom_call.1} parent=31 // pred_region
          %v1698 = vld [vmem:[#allocation8] sm:$0xff]
          %v1699 = vld [vmem:[#allocation8 + $0x8] sm:$0xff]
          %v1700 = vld [vmem:[#allocation8 + $0x10] sm:$0xff]
          %v1701 = vld [vmem:[#allocation8 + $0x18] sm:$0xff]
          %v1702 = vld [vmem:[#allocation8 + $0x20] sm:$0xff]
          %v1703 = vld [vmem:[#allocation8 + $0x28] sm:$0xff]
          %v1704 = vld [vmem:[#allocation8 + $0x30] sm:$0xff]
          %v1705 = vld [vmem:[#allocation8 + $0x38] sm:$0xff]
          %v1706 = vld [vmem:[#allocation8 + $0x40] sm:$0xff]
          %v1707 = vld [vmem:[#allocation8 + $0x48] sm:$0xff]
          %v1708 = vld [vmem:[#allocation8 + $0x50] sm:$0xff]
          %v1709 = vld [vmem:[#allocation8 + $0x58] sm:$0xff]
          %v1710 = vld [vmem:[#allocation8 + $0x60] sm:$0xff]
          %v1711 = vld [vmem:[#allocation8 + $0x68] sm:$0xff]
          %v1712 = vld [vmem:[#allocation8 + $0x70] sm:$0xff]
          %v1713 = vld [vmem:[#allocation8 + $0x78] sm:$0xff]
          %v1714 = vld [vmem:[#allocation8 + $0x80] sm:$0xff]
          %v1715 = vld [vmem:[#allocation8 + $0x88] sm:$0xff]
          %v1716 = vld [vmem:[#allocation8 + $0x90] sm:$0xff]
          %v1717 = vld [vmem:[#allocation8 + $0x98] sm:$0xff]
          %v1718 = vld [vmem:[#allocation8 + $0xa0] sm:$0xff]
          %v1719 = vld [vmem:[#allocation8 + $0xa8] sm:$0xff]
          %v1720 = vld [vmem:[#allocation8 + $0xb0] sm:$0xff]
          %v1721 = vld [vmem:[#allocation8 + $0xb8] sm:$0xff]
          %v1722 = vld [vmem:[#allocation8 + $0xc0] sm:$0xff]
          %v1723 = vld [vmem:[#allocation8 + $0xc8] sm:$0xff]
          %v1724 = vld [vmem:[#allocation8 + $0xd0] sm:$0xff]
          %v1725 = vld [vmem:[#allocation8 + $0xd8] sm:$0xff]
          %v1726 = vld [vmem:[#allocation8 + $0xe0] sm:$0xff]
          %v1727 = vld [vmem:[#allocation8 + $0xe8] sm:$0xff]
          %v1728 = vld [vmem:[#allocation8 + $0xf0] sm:$0xff]
          %v1729 = vld [vmem:[#allocation8 + $0xf8] sm:$0xff]
          %v1730 = vld [vmem:[#allocation8 + $0x100] sm:$0xff]
          %v1731 = vld [vmem:[#allocation8 + $0x108] sm:$0xff]
          %v1732 = vld [vmem:[#allocation8 + $0x110] sm:$0xff]
          %v1733 = vld [vmem:[#allocation8 + $0x118] sm:$0xff]
          %v1734 = vld [vmem:[#allocation8 + $0x120] sm:$0xff]
          %v1735 = vld [vmem:[#allocation8 + $0x128] sm:$0xff]
          %v1736 = vld [vmem:[#allocation8 + $0x130] sm:$0xff]
          %v1737 = vld [vmem:[#allocation8 + $0x138] sm:$0xff]
          %v1738 = vld [vmem:[#allocation8 + $0x140] sm:$0xff]
          %v1739 = vld [vmem:[#allocation8 + $0x148] sm:$0xff]
          %v1740 = vld [vmem:[#allocation8 + $0x150] sm:$0xff]
          %v1741 = vld [vmem:[#allocation8 + $0x158] sm:$0xff]
          %v1742 = vld [vmem:[#allocation8 + $0x160] sm:$0xff]
          %v1743 = vld [vmem:[#allocation8 + $0x168] sm:$0xff]
          %v1744 = vld [vmem:[#allocation8 + $0x170] sm:$0xff]
          %v1745 = vld [vmem:[#allocation8 + $0x178] sm:$0xff]
          %v1746 = vld [vmem:[#allocation8 + $0x180] sm:$0xff]
          %v1747 = vld [vmem:[#allocation8 + $0x188] sm:$0xff]
          %v1748 = vld [vmem:[#allocation8 + $0x190] sm:$0xff]
          %v1749 = vld [vmem:[#allocation8 + $0x198] sm:$0xff]
          %v1750 = vld [vmem:[#allocation8 + $0x1a0] sm:$0xff]
          %v1751 = vld [vmem:[#allocation8 + $0x1a8] sm:$0xff]
          %v1752 = vld [vmem:[#allocation8 + $0x1b0] sm:$0xff]
          %v1753 = vld [vmem:[#allocation8 + $0x1b8] sm:$0xff]
          %v1754 = vld [vmem:[#allocation8 + $0x1c0] sm:$0xff]
          %v1755 = vld [vmem:[#allocation8 + $0x1c8] sm:$0xff]
          %v1756 = vld [vmem:[#allocation8 + $0x1d0] sm:$0xff]
          %v1757 = vld [vmem:[#allocation8 + $0x1d8] sm:$0xff]
          %v1758 = vld [vmem:[#allocation8 + $0x1e0] sm:$0xff]
          %v1759 = vld [vmem:[#allocation8 + $0x1e8] sm:$0xff]
          %v1760 = vld [vmem:[#allocation8 + $0x1f0] sm:$0xff]
          %v1761 = vld [vmem:[#allocation8 + $0x1f8] sm:$0xff]
          %v1762 = vld [vmem:[#allocation7] sm:$0x3]
          %v1764 = vlaneseq
          %v1765 = vshrl.u32 %v1764, 7
          %v1766 = vsub.s32 0, %v1765
          %v1767 = vrot.slane %v1762, %v1766
          %v1768 = vlaneseq
          %v1769 = vshrl.u32 %v1768, 7
          %v1770 = vsub.s32 1, %v1769
          %v1771 = vrot.slane %v1762, %v1770
          %v1774 = vadd.f32 %v1698, %v1767
          %v1775 = vadd.f32 %v1699, %v1771
          %v1776 = vadd.f32 %v1700, %v1767
          %v1777 = vadd.f32 %v1701, %v1771
          %v1778 = vadd.f32 %v1702, %v1767
          %v1779 = vadd.f32 %v1703, %v1771
          %v1780 = vadd.f32 %v1704, %v1767
          %v1781 = vadd.f32 %v1705, %v1771
          %v1782 = vadd.f32 %v1706, %v1767
          %v1783 = vadd.f32 %v1707, %v1771
          %v1784 = vadd.f32 %v1708, %v1767
          %v1785 = vadd.f32 %v1709, %v1771
          %v1786 = vadd.f32 %v1710, %v1767
          %v1787 = vadd.f32 %v1711, %v1771
          %v1788 = vadd.f32 %v1712, %v1767
          %v1789 = vadd.f32 %v1713, %v1771
          %v1790 = vadd.f32 %v1714, %v1767
          %v1791 = vadd.f32 %v1715, %v1771
          %v1792 = vadd.f32 %v1716, %v1767
          %v1793 = vadd.f32 %v1717, %v1771
          %v1794 = vadd.f32 %v1718, %v1767
          %v1795 = vadd.f32 %v1719, %v1771
          %v1796 = vadd.f32 %v1720, %v1767
          %v1797 = vadd.f32 %v1721, %v1771
          %v1798 = vadd.f32 %v1722, %v1767
          %v1799 = vadd.f32 %v1723, %v1771
          %v1800 = vadd.f32 %v1724, %v1767
          %v1801 = vadd.f32 %v1725, %v1771
          %v1802 = vadd.f32 %v1726, %v1767
          %v1803 = vadd.f32 %v1727, %v1771
          %v1804 = vadd.f32 %v1728, %v1767
          %v1805 = vadd.f32 %v1729, %v1771
          %v1806 = vadd.f32 %v1730, %v1767
          %v1807 = vadd.f32 %v1731, %v1771
          %v1808 = vadd.f32 %v1732, %v1767
          %v1809 = vadd.f32 %v1733, %v1771
          %v1810 = vadd.f32 %v1734, %v1767
          %v1811 = vadd.f32 %v1735, %v1771
          %v1812 = vadd.f32 %v1736, %v1767
          %v1813 = vadd.f32 %v1737, %v1771
          %v1814 = vadd.f32 %v1738, %v1767
          %v1815 = vadd.f32 %v1739, %v1771
          %v1816 = vadd.f32 %v1740, %v1767
          %v1817 = vadd.f32 %v1741, %v1771
          %v1818 = vadd.f32 %v1742, %v1767
          %v1819 = vadd.f32 %v1743, %v1771
          %v1820 = vadd.f32 %v1744, %v1767
          %v1821 = vadd.f32 %v1745, %v1771
          %v1822 = vadd.f32 %v1746, %v1767
          %v1823 = vadd.f32 %v1747, %v1771
          %v1824 = vadd.f32 %v1748, %v1767
          %v1825 = vadd.f32 %v1749, %v1771
          %v1826 = vadd.f32 %v1750, %v1767
          %v1827 = vadd.f32 %v1751, %v1771
          %v1828 = vadd.f32 %v1752, %v1767
          %v1829 = vadd.f32 %v1753, %v1771
          %v1830 = vadd.f32 %v1754, %v1767
          %v1831 = vadd.f32 %v1755, %v1771
          %v1832 = vadd.f32 %v1756, %v1767
          %v1833 = vadd.f32 %v1757, %v1771
          %v1834 = vadd.f32 %v1758, %v1767
          %v1835 = vadd.f32 %v1759, %v1771
          %v1836 = vadd.f32 %v1760, %v1767
          %v1837 = vadd.f32 %v1761, %v1771
          %1838 = vst [vmem:[#allocation8] sm:$0xff] %v1774
          %1839 = vst [vmem:[#allocation8 + $0x8] sm:$0xff] %v1775
          %1840 = vst [vmem:[#allocation8 + $0x10] sm:$0xff] %v1776
          %1841 = vst [vmem:[#allocation8 + $0x18] sm:$0xff] %v1777
          %1842 = vst [vmem:[#allocation8 + $0x20] sm:$0xff] %v1778
          %1843 = vst [vmem:[#allocation8 + $0x28] sm:$0xff] %v1779
          %1844 = vst [vmem:[#allocation8 + $0x30] sm:$0xff] %v1780
          %1845 = vst [vmem:[#allocation8 + $0x38] sm:$0xff] %v1781
          %1846 = vst [vmem:[#allocation8 + $0x40] sm:$0xff] %v1782
          %1847 = vst [vmem:[#allocation8 + $0x48] sm:$0xff] %v1783
          %1848 = vst [vmem:[#allocation8 + $0x50] sm:$0xff] %v1784
          %1849 = vst [vmem:[#allocation8 + $0x58] sm:$0xff] %v1785
          %1850 = vst [vmem:[#allocation8 + $0x60] sm:$0xff] %v1786
          %1851 = vst [vmem:[#allocation8 + $0x68] sm:$0xff] %v1787
          %1852 = vst [vmem:[#allocation8 + $0x70] sm:$0xff] %v1788
          %1853 = vst [vmem:[#allocation8 + $0x78] sm:$0xff] %v1789
          %1854 = vst [vmem:[#allocation8 + $0x80] sm:$0xff] %v1790
          %1855 = vst [vmem:[#allocation8 + $0x88] sm:$0xff] %v1791
          %1856 = vst [vmem:[#allocation8 + $0x90] sm:$0xff] %v1792
          %1857 = vst [vmem:[#allocation8 + $0x98] sm:$0xff] %v1793
          %1858 = vst [vmem:[#allocation8 + $0xa0] sm:$0xff] %v1794
          %1859 = vst [vmem:[#allocation8 + $0xa8] sm:$0xff] %v1795
          %1860 = vst [vmem:[#allocation8 + $0xb0] sm:$0xff] %v1796
          %1861 = vst [vmem:[#allocation8 + $0xb8] sm:$0xff] %v1797
          %1862 = vst [vmem:[#allocation8 + $0xc0] sm:$0xff] %v1798
          %1863 = vst [vmem:[#allocation8 + $0xc8] sm:$0xff] %v1799
          %1864 = vst [vmem:[#allocation8 + $0xd0] sm:$0xff] %v1800
          %1865 = vst [vmem:[#allocation8 + $0xd8] sm:$0xff] %v1801
          %1866 = vst [vmem:[#allocation8 + $0xe0] sm:$0xff] %v1802
          %1867 = vst [vmem:[#allocation8 + $0xe8] sm:$0xff] %v1803
          %1868 = vst [vmem:[#allocation8 + $0xf0] sm:$0xff] %v1804
          %1869 = vst [vmem:[#allocation8 + $0xf8] sm:$0xff] %v1805
          %1870 = vst [vmem:[#allocation8 + $0x100] sm:$0xff] %v1806
          %1871 = vst [vmem:[#allocation8 + $0x108] sm:$0xff] %v1807
          %1872 = vst [vmem:[#allocation8 + $0x110] sm:$0xff] %v1808
          %1873 = vst [vmem:[#allocation8 + $0x118] sm:$0xff] %v1809
          %1874 = vst [vmem:[#allocation8 + $0x120] sm:$0xff] %v1810
          %1875 = vst [vmem:[#allocation8 + $0x128] sm:$0xff] %v1811
          %1876 = vst [vmem:[#allocation8 + $0x130] sm:$0xff] %v1812
          %1877 = vst [vmem:[#allocation8 + $0x138] sm:$0xff] %v1813
          %1878 = vst [vmem:[#allocation8 + $0x140] sm:$0xff] %v1814
          %1879 = vst [vmem:[#allocation8 + $0x148] sm:$0xff] %v1815
          %1880 = vst [vmem:[#allocation8 + $0x150] sm:$0xff] %v1816
          %1881 = vst [vmem:[#allocation8 + $0x158] sm:$0xff] %v1817
          %1882 = vst [vmem:[#allocation8 + $0x160] sm:$0xff] %v1818
          %1883 = vst [vmem:[#allocation8 + $0x168] sm:$0xff] %v1819
          %1884 = vst [vmem:[#allocation8 + $0x170] sm:$0xff] %v1820
          %1885 = vst [vmem:[#allocation8 + $0x178] sm:$0xff] %v1821
          %1886 = vst [vmem:[#allocation8 + $0x180] sm:$0xff] %v1822
          %1887 = vst [vmem:[#allocation8 + $0x188] sm:$0xff] %v1823
          %1888 = vst [vmem:[#allocation8 + $0x190] sm:$0xff] %v1824
          %1889 = vst [vmem:[#allocation8 + $0x198] sm:$0xff] %v1825
          %1890 = vst [vmem:[#allocation8 + $0x1a0] sm:$0xff] %v1826
          %1891 = vst [vmem:[#allocation8 + $0x1a8] sm:$0xff] %v1827
          %1892 = vst [vmem:[#allocation8 + $0x1b0] sm:$0xff] %v1828
          %1893 = vst [vmem:[#allocation8 + $0x1b8] sm:$0xff] %v1829
          %1894 = vst [vmem:[#allocation8 + $0x1c0] sm:$0xff] %v1830
          %1895 = vst [vmem:[#allocation8 + $0x1c8] sm:$0xff] %v1831
          %1896 = vst [vmem:[#allocation8 + $0x1d0] sm:$0xff] %v1832
          %1897 = vst [vmem:[#allocation8 + $0x1d8] sm:$0xff] %v1833
          %1898 = vst [vmem:[#allocation8 + $0x1e0] sm:$0xff] %v1834
          %1899 = vst [vmem:[#allocation8 + $0x1e8] sm:$0xff] %v1835
          %1900 = vst [vmem:[#allocation8 + $0x1f0] sm:$0xff] %v1836
          %1901 = vst [vmem:[#allocation8 + $0x1f8] sm:$0xff] %v1837
        $region52: #{tpu_custom_call.1} parent=31 // pred_fallthru
          _
        // Predicated region
        $region53: #{tpu_custom_call.1} parent=31 // pred_check
          %p1902 = pneg %p142
        $region54: #{tpu_custom_call.1} parent=31 // pred_check_branch
          %1904 = sbr.rel (%p1902) target = $region56
        $region55: #{tpu_custom_call.1} parent=31 // pred_region
          %s1905 = smul.u32 32, %s26
          %s1906 = smul.u32 2, %s27
          %s1908 = ssub.s32 8192, 8192
          %1909 = vsyncadd [#allocation4], %s1908
          %s1910 = smul.addr %s1905, 2
          %s1911 = sadd.s32 %s1906, %s1910
          %s1912 = smul.addr %s1911, 128
          %s1913 = scalar_lea.hbm %s3, %s1912
          %s1914 = sshll.u32 [#allocation8], 4
          %s1915 = int_to_ptr.vmem [resolvable:$true] %s1914
          %1920 = dma.vmem_to_hbm [thread:$0]  %s1915, 8192, %s1913, [#allocation4], 256, 256, 16
        $region56: #{tpu_custom_call.1} parent=31 // pred_fallthru
          _
        // Predicated region
        $region57: #{tpu_custom_call.1} parent=31 // pred_check
          %p1921 = pneg %p142
        $region58: #{tpu_custom_call.1} parent=31 // pred_check_branch
          %1923 = sbr.rel (%p1921) target = $region60
        $region59: #{tpu_custom_call.1} parent=31 // pred_region
          %1924 = dma.done [#allocation4], 8192
        $region60: #{tpu_custom_call.1} parent=31 // pred_fallthru
          _
      $region32: #{tpu_custom_call.1} parent=5 // pred_fallthru
        _
      %p1925 = scmp.le.s32.totalorder 2, %s16
      // Predicated region
      $region61: #{tpu_custom_call.1} parent=5 // pred_check
        %p1926 = pneg %p1925
      $region62: #{tpu_custom_call.1} parent=5 // pred_check_branch
        %1928 = sbr.rel (%p1926) target = $region64
      $region63: #{tpu_custom_call.1} parent=5 // pred_region
        %s1929 = ssub.s32 %s16, 2
      $region64: #{tpu_custom_call.1} parent=5 // pred_fallthru
        _
    $region6: #{tpu_custom_call.1} parent=1 // loop_footer
      %s20 = sadd.s32 1, %s16
    $region7: #{tpu_custom_call.1} parent=1 // loop_footer_branch
      %15 = sbr.rel target = $region3
    $region8: #{tpu_custom_call.1} parent=1 // loop_exit
      _
    %1930 = vsyncpa [#allocation3], 1
    %s1931 = scalar_lea.sflag [#allocation3], 1
    %1932 = vsyncpa %s1931, 1
    %1933 = vsyncpa [#allocation6], 1
    %s1934 = scalar_lea.sflag [#allocation6], 1
    %1935 = vsyncpa %s1934, 1
    %1936 = vsyncpa [#allocation4], 1
    %s1937 = scalar_lea.sflag [#allocation4], 1
    %1938 = vsyncpa %s1937, 1

</llo_original>
